<compile_context>
chip_gen: v7x
topology: tpu7x:2x2x1
jax: 0.10.0
libtpu: 0.0.40
codegen_flags: <defaults>
</compile_context>

<pallas_src>
import functools

import jax
import jax.numpy as jnp
from jax.experimental import pallas as pl
from jax.experimental.pallas import tpu as pltpu

F32 = jnp.float32
BF16 = jnp.bfloat16
BN_EPS = 1e-5


def _round_up(x, m):
    return (x + m - 1) // m * m


def _pick_tile(dim, target, mult):
    """Largest tile t <= target with dim % t == 0 and t % mult == 0, else the full dim."""
    if dim <= target:
        return dim
    t = (target // mult) * mult
    while t >= mult:
        if dim % t == 0:
            return t
        t -= mult
    return dim


# ----------------------------------------------------------------------------
# Pallas kernels
# ----------------------------------------------------------------------------
def _bmm_kernel(*refs, epilogue, act):
    """Batched matmul with fused BN/activation/gate/residual epilogues.

    refs = (x(1,ts,tk), w(tk,tn), scale(1,1,tn), bias(1,1,tn), *extras,
            out(1,ts,tn), acc(ts,tn))
    """
    x_ref, w_ref, s_ref, b_ref = refs[:4]
    out_ref, acc_ref = refs[-2], refs[-1]
    extras = refs[4:-2]
    k = pl.program_id(3)

    @pl.when(k == 0)
    def _():
        acc_ref[...] = jnp.zeros_like(acc_ref)

    acc_ref[...] += jnp.dot(x_ref[0], w_ref[...],
                            preferred_element_type=jnp.float32)

    @pl.when(k == pl.num_programs(3) - 1)
    def _():
        z = acc_ref[...] * s_ref[0] + b_ref[0]
        if epilogue == "plain":
            if act == "relu":
                z = jnp.maximum(z, 0.0)
            elif act == "sigmoid":
                z = jax.nn.sigmoid(z)
            y = z
        elif epilogue == "gate_bn_relu":
            # relu(bn2(out3 + gap * sigmoid(z)))
            o3_ref, g_ref, s2_ref, c2_ref = extras
            y = (o3_ref[0].astype(jnp.float32)
                 + g_ref[0] * jax.nn.sigmoid(z)) * s2_ref[0] + c2_ref[0]
            y = jnp.maximum(y, 0.0)
        elif epilogue == "add_relu":
            # relu(bn3(conv3) + identity)
            (r_ref,) = extras
            y = jnp.maximum(z + r_ref[0].astype(jnp.float32), 0.0)
        else:
            raise ValueError(epilogue)
        out_ref[0] = y.astype(out_ref.dtype)


def bmm(x, w, *, scale=None, bias=None, bias_per_image=False, act="none",
        epilogue="plain", extras=(), out_dtype=BF16,
        ts_target=256, tn_target=256, tk_target=512):
    """act/epilogue((x @ w) * scale + bias), x: (B, M, K), w: (K, Cout).

    Operands are fed to the MXU in bfloat16, accumulation is float32.  Tile sizes
    are chosen to divide the real M/N/K so no activation padding/slicing happens.
    """
    Nb, M, K = x.shape
    Kw, Co = w.shape
    assert K == Kw
    # Align K to the lane width only when it is large but unaligned (exact: zero pad).
    if K >= 128 and K % 128 != 0:
        Kp = _round_up(K, 128)
        x = jnp.pad(x, ((0, 0), (0, 0), (0, Kp - K)))
        w = jnp.pad(w, ((0, Kp - K), (0, 0)))
        K = Kp

    ts = _pick_tile(M, ts_target, 8)
    tn = _pick_tile(Co, tn_target, 128)
    tk = _pick_tile(K, tk_target, 128)

    scale = jnp.ones((Co,), F32) if scale is None else scale
    bias = jnp.zeros((Co,), F32) if bias is None else bias
    scale3 = scale.astype(F32).reshape(1, 1, Co)
    bias3 = bias.astype(F32).reshape(Nb if bias_per_image else 1, 1, Co)

    inputs = [x.astype(BF16), w.astype(BF16), scale3, bias3]
    in_specs = [
        pl.BlockSpec((1, ts, tk), lambda b, s, j, k: (b, s, k)),
        pl.BlockSpec((tk, tn), lambda b, s, j, k: (k, j)),
        pl.BlockSpec((1, 1, tn), lambda b, s, j, k: (0, 0, j)),
        pl.BlockSpec((1, 1, tn),
                     (lambda b, s, j, k: (b, 0, j)) if bias_per_image
                     else (lambda b, s, j, k: (0, 0, j))),
    ]
    if epilogue == "gate_bn_relu":
        out3, gapvec, s2, c2 = extras
        inputs += [out3.astype(BF16),
                   gapvec.astype(F32).reshape(Nb, 1, Co),
                   s2.astype(F32).reshape(1, 1, Co),
                   c2.astype(F32).reshape(1, 1, Co)]
        in_specs += [pl.BlockSpec((1, ts, tn), lambda b, s, j, k: (b, s, j)),
                     pl.BlockSpec((1, 1, tn), lambda b, s, j, k: (b, 0, j)),
                     pl.BlockSpec((1, 1, tn), lambda b, s, j, k: (0, 0, j)),
                     pl.BlockSpec((1, 1, tn), lambda b, s, j, k: (0, 0, j))]
    elif epilogue == "add_relu":
        (res,) = extras
        inputs += [res.astype(BF16)]
        in_specs += [pl.BlockSpec((1, ts, tn), lambda b, s, j, k: (b, s, j))]

    grid = (Nb, M // ts, Co // tn, K // tk)
    return pl.pallas_call(
        functools.partial(_bmm_kernel, epilogue=epilogue, act=act),
        out_shape=jax.ShapeDtypeStruct((Nb, M, Co), out_dtype),
        grid_spec=pltpu.PrefetchScalarGridSpec(
            num_scalar_prefetch=0,
            grid=grid,
            in_specs=in_specs,
            out_specs=pl.BlockSpec((1, ts, tn), lambda b, s, j, k: (b, s, j)),
            scratch_shapes=[pltpu.VMEM((ts, tn), jnp.float32)]),
        compiler_params=pltpu.CompilerParams(
            dimension_semantics=("parallel", "parallel", "parallel", "arbitrary")),
    )(*inputs)


def _gap_kernel(x_ref, o_ref, *, inv_hw):
    @pl.when(pl.program_id(1) == 0)
    def _():
        o_ref[...] = jnp.zeros_like(o_ref)
    part = jnp.sum(x_ref[0].astype(jnp.float32), axis=0, keepdims=True) * inv_hw
    o_ref[0] += part


def global_avg_pool(x3, hw=None):
    """AdaptiveAvgPool2d(1): x3 = (B, HW[, zero-padded], C) -> (B, C) float32.

    Tiled over H*W with a VMEM-resident accumulator (keeps the block well inside
    v7x's scoped-VMEM budget and preserves double-buffered DMA)."""
    Nb, HWp, C = x3.shape
    hw = HWp if hw is None else hw
    ts = _pick_tile(HWp, 512, 8)
    out = pl.pallas_call(
        functools.partial(_gap_kernel, inv_hw=1.0 / hw),
        out_shape=jax.ShapeDtypeStruct((Nb, 1, C), jnp.float32),
        grid_spec=pltpu.PrefetchScalarGridSpec(
            num_scalar_prefetch=0,
            grid=(Nb, HWp // ts),
            in_specs=[pl.BlockSpec((1, ts, C), lambda b, s: (b, s, 0))],
            out_specs=pl.BlockSpec((1, 1, C), lambda b, s: (b, 0, 0))),
        compiler_params=pltpu.CompilerParams(
            dimension_semantics=("parallel", "arbitrary")),
    )(x3)
    return out.reshape(Nb, C)


def _max9_kernel(*refs):
    out_ref = refs[-1]
    m = refs[0][...]
    for r in refs[1:-1]:
        m = jnp.maximum(m, r[...])
    out_ref[...] = m


def maxpool_3x3_s2_p1(x):
    """3x3 stride-2 pad-1 max-pool; the 9 window views are fed as 9 inputs
    (no (9, M, C) stack materialization)."""
    N, H, W, C = x.shape
    Ho = (H - 1) // 2 + 1
    Wo = (W - 1) // 2 + 1
    xp = jnp.pad(x, ((0, 0), (1, 1), (1, 1), (0, 0)), constant_values=-1e9)
    views = []
    for i in range(3):
        for j in range(3):
            views.append(
                xp[:, i:i + (Ho - 1) * 2 + 1:2,
                   j:j + (Wo - 1) * 2 + 1:2, :].reshape(N, Ho * Wo, C))
    ts = _pick_tile(Ho * Wo, 256, 8)
    out = pl.pallas_call(
        _max9_kernel,
        out_shape=jax.ShapeDtypeStruct((N, Ho * Wo, C), x.dtype),
        grid_spec=pltpu.PrefetchScalarGridSpec(
            num_scalar_prefetch=0,
            grid=(N, (Ho * Wo) // ts),
            in_specs=[pl.BlockSpec((1, ts, C), lambda b, s: (b, s, 0))] * 9,
            out_specs=pl.BlockSpec((1, ts, C), lambda b, s: (b, s, 0))),
        compiler_params=pltpu.CompilerParams(
            dimension_semantics=("parallel", "parallel")),
    )(*views)
    return out.reshape(N, Ho, Wo, C)


def _gap_mlp_kernel(g_ref, w1_ref, b1_ref, w2_ref, b2_ref, wa_ref, ba_ref,
                    gap2_ref, g1_ref):
    h = jnp.maximum(
        jnp.dot(g_ref[...], w1_ref[...], preferred_element_type=jnp.float32)
        + b1_ref[...], 0.0)
    gap2 = jnp.dot(h, w2_ref[...], preferred_element_type=jnp.float32) + b2_ref[...]
    g1 = jnp.dot(gap2, wa_ref[...], preferred_element_type=jnp.float32) + ba_ref[...]
    gap2_ref[...] = gap2
    g1_ref[...] = g1


def gap_mlp(gap, w_fc1, b_fc1, w_fc2, b_fc2, w_fus1_gap, b_fus1):
    """Tiny-M fused kernel:  gap2 = fc2(relu(fc1(gap))),  g1 = gap2 @ W1_gap + b_fus1."""
    Nb, C = gap.shape
    Mp = _round_up(Nb, 8)                       # keep one full sublane of rows
    gp = jnp.pad(gap, ((0, Mp - Nb), (0, 0)))
    gap2, g1 = pl.pallas_call(
        _gap_mlp_kernel,
        out_shape=(jax.ShapeDtypeStruct((Mp, C), F32),
                   jax.ShapeDtypeStruct((Mp, C), F32)),
    )(gp, w_fc1, b_fc1.reshape(1, C), w_fc2, b_fc2.reshape(1, C),
      w_fus1_gap, b_fus1.reshape(1, C))
    return gap2[:Nb], g1[:Nb]


def _dense_kernel(x_ref, w_ref, b_ref, o_ref):
    o_ref[...] = (jnp.dot(x_ref[...], w_ref[...],
                          preferred_element_type=jnp.float32)
                  + b_ref[...]).astype(o_ref.dtype)


def dense_small(x, w, b):
    """Final FC at M = batch: single small kernel (tm = 8, no 128-row padding)."""
    M, K = x.shape
    _, N = w.shape
    Mp, Np = _round_up(M, 8), _round_up(N, 128)
    xp = jnp.pad(x.astype(F32), ((0, Mp - M), (0, 0)))
    wp = jnp.pad(w.astype(F32), ((0, 0), (0, Np - N)))
    bp = jnp.pad(b.astype(F32), (0, Np - N)).reshape(1, Np)
    out = pl.pallas_call(
        _dense_kernel,
        out_shape=jax.ShapeDtypeStruct((Mp, Np), F32),
    )(xp, wp, bp)
    return out[:M, :N]


# ----------------------------------------------------------------------------
# Plain-JAX glue: im2col / parameters
# ----------------------------------------------------------------------------
def im2col(x, kh, kw, stride, pad):
    """(N,H,W,C) -> ((N, Ho*Wo, kh*kw*C), (Ho, Wo)), batch dim preserved.

    TODO(synk): the kh*kw taps could be folded into the matmul K-grid (manual DMA of
    shifted rows) to avoid the patch-matrix expansion in HBM; kept as XLA glue here.
    """
    N, H, W, C = x.shape
    Ho = (H + 2 * pad - kh) // stride + 1
    Wo = (W + 2 * pad - kw) // stride + 1
    xp = jnp.pad(x, ((0, 0), (pad, pad), (pad, pad), (0, 0)))
    cols = []
    for i in range(kh):
        for j in range(kw):
            cols.append(xp[:, i:i + (Ho - 1) * stride + 1:stride,
                           j:j + (Wo - 1) * stride + 1:stride, :])
    patches = jnp.concatenate(cols, axis=-1)        # (N, Ho, Wo, kh*kw*C)
    return patches.reshape(N, Ho * Wo, kh * kw * C), (Ho, Wo)


def conv_w(key, kh, kw, cin, cout, dtype=BF16):
    # kaiming_normal_(mode='fan_out', nonlinearity='relu'), deterministic
    fan_out = kh * kw * cout
    std = (2.0 / fan_out) ** 0.5
    w = jax.random.normal(key, (kh, kw, cin, cout), F32) * std
    return w.reshape(kh * kw * cin, cout).astype(dtype)


def bn_params(c):
    gamma, beta = jnp.ones((c,), F32), jnp.zeros((c,), F32)
    mean, var = jnp.zeros((c,), F32), jnp.ones((c,), F32)
    scale = gamma / jnp.sqrt(var + BN_EPS)
    bias = beta - mean * scale
    return scale, bias


def make_block_params(key, inplanes, planes, stride, base_width=64, groups=1):
    width = int(planes * (base_width / 64.0)) * groups
    expansion = 4
    keys = jax.random.split(key, 8)
    p = {"stride": stride}
    p["w_conv1"] = conv_w(keys[0], 1, 1, inplanes, width)
    p["bn1"] = bn_params(width)
    p["w_conv2"] = conv_w(keys[1], 3, 3, width, width)
    p["bn2"] = bn_params(width)
    # tiny gap-MLP runs in one small fused kernel -> keep f32
    p["w_fc1"] = conv_w(keys[2], 1, 1, width, width, dtype=F32)
    p["b_fc1"] = jnp.zeros((width,), F32)
    p["w_fc2"] = conv_w(keys[3], 1, 1, width, width, dtype=F32)
    p["b_fc2"] = jnp.zeros((width,), F32)
    # fusion_conv1 weight is split (static, at param creation) into its gap-half and
    # out3-half so the big-M matmul never sees the concat / gap broadcast.
    w_fus1 = conv_w(keys[4], 1, 1, 2 * width, width, dtype=F32)
    p["w_fus1_gap"] = w_fus1[:width]
    p["w_fus1_out"] = w_fus1[width:].astype(BF16)
    p["b_fus1"] = jnp.zeros((width,), F32)
    p["w_fus2"] = conv_w(keys[5], 1, 1, width, width)
    p["b_fus2"] = jnp.zeros((width,), F32)
    p["w_conv3"] = conv_w(keys[6], 1, 1, width, planes * expansion)
    p["bn3"] = bn_params(planes * expansion)
    if stride != 1 or inplanes != planes * expansion:
        p["w_ds"] = conv_w(keys[7], 1, 1, inplanes, planes * expansion)
        p["bn_ds"] = bn_params(planes * expansion)
    else:
        p["w_ds"] = None
    return p, planes * expansion


def make_resnet_params(key, layers, num_classes=10):
    k_stem, k_fc, *k_layers = jax.random.split(key, 2 + len(layers))
    params = {"w_stem": conv_w(k_stem, 7, 7, 3, 64), "bn_stem": bn_params(64)}
    inplanes = 64
    params["layers"] = []
    for li, (planes, nblocks, st) in enumerate(
            zip([64, 128, 256, 512], layers, [1, 2, 2, 2])):
        blocks = []
        bkeys = jax.random.split(k_layers[li], nblocks)
        for bi in range(nblocks):
            stride = st if bi == 0 else 1
            bp, inplanes = make_block_params(bkeys[bi], inplanes, planes, stride)
            blocks.append(bp)
        params["layers"].append(blocks)
    kw, _ = jax.random.split(k_fc)
    params["w_fc"] = jax.random.normal(kw, (512 * 4, num_classes), F32) * 0.01
    params["b_fc"] = jnp.zeros((num_classes,), F32)
    return params


# ----------------------------------------------------------------------------
# Forward pass
# ----------------------------------------------------------------------------
def bottleneck_forward(x, p):
    N, H, W, Cin = x.shape
    stride = p["stride"]
    width = p["w_conv1"].shape[1]

    # conv1 (1x1) + bn1 + relu (fused epilogue)
    out1 = bmm(x.reshape(N, H * W, Cin), p["w_conv1"],
               scale=p["bn1"][0], bias=p["bn1"][1], act="relu")
    out1 = out1.reshape(N, H, W, width)

    # conv2 (3x3, stride).  NOTE: bn2 is applied *after* the adaptive fusion,
    # exactly as in the PyTorch reference.
    cols, (Ho, Wo) = im2col(out1, 3, 3, stride, 1)
    HW = Ho * Wo
    HWp = max(_round_up(HW, 8), 8)              # keep >= one sublane of rows
    if HWp != HW:
        cols = jnp.pad(cols, ((0, 0), (0, HWp - HW), (0, 0)))
    out3 = bmm(cols, p["w_conv2"])              # (N, HWp, width); pad rows are 0

    # pixel-aware adaptive branch (gap -> fc1 -> fc2 -> fusion_conv1 gap-half)
    gap = global_avg_pool(out3, hw=HW)                                # (N, width)
    gap2, g1 = gap_mlp(gap, p["w_fc1"], p["b_fc1"], p["w_fc2"], p["b_fc2"],
                       p["w_fus1_gap"], p["b_fus1"])
    # fusion_conv1: relu(out3 @ W1_out + (gap2 @ W1_gap + b_fus1))
    # (per-image term added in the epilogue: no concat, no gap_up broadcast in HBM)
    oc1 = bmm(out3, p["w_fus1_out"], bias=g1, bias_per_image=True, act="relu")
    # fusion_conv2 + sigmoid gate + bn2 + relu, all fused into the matmul epilogue:
    #   fused = relu(bn2(out3 + gap2 * sigmoid(oc1 @ w_fus2 + b_fus2)))
    fused = bmm(oc1, p["w_fus2"], bias=p["b_fus2"], epilogue="gate_bn_relu",
                extras=(out3, gap2, p["bn2"][0], p["bn2"][1]))

    # residual path
    if p["w_ds"] is not None:
        xs = x[:, ::stride, ::stride, :].reshape(N, HW, Cin)
        if HWp != HW:
            xs = jnp.pad(xs, ((0, 0), (0, HWp - HW), (0, 0)))
        identity = bmm(xs, p["w_ds"], scale=p["bn_ds"][0], bias=p["bn_ds"][1])
    else:
        identity = x.reshape(N, HW, Cin)
        if HWp != HW:
            identity = jnp.pad(identity, ((0, 0), (0, HWp - HW), (0, 0)))

    # conv3 (1x1) + bn3 + residual add + relu fused into the matmul epilogue
    out = bmm(fused, p["w_conv3"], scale=p["bn3"][0], bias=p["bn3"][1],
              epilogue="add_relu", extras=(identity,))
    if HWp != HW:
        out = out[:, :HW]
    return out.reshape(N, Ho, Wo, -1)


def resnet_forward(params, x_nchw):
    # boundary transpose: PyTorch NCHW -> NHWC; activations travel in bfloat16
    x = jnp.transpose(x_nchw, (0, 2, 3, 1)).astype(BF16)
    N = x.shape[0]

    # stem: 7x7 s2 p3 conv + bn + relu, then 3x3 s2 p1 maxpool
    cols, (Ho, Wo) = im2col(x, 7, 7, 2, 3)
    out = bmm(cols, params["w_stem"], scale=params["bn_stem"][0],
              bias=params["bn_stem"][1], act="relu").reshape(N, Ho, Wo, 64)
    out = maxpool_3x3_s2_p1(out)

    for blocks in params["layers"]:
        for bp in blocks:
            out = bottleneck_forward(out, bp)

    Nb, Hf, Wf, Cf = out.shape
    pooled = global_avg_pool(out.reshape(Nb, Hf * Wf, Cf))            # (N, 2048)
    logits = dense_small(pooled, params["w_fc"], params["b_fc"])
    return logits


if __name__ == "__main__":
    key = jax.random.PRNGKey(0)
    kp, kx = jax.random.split(key)
    # ResNet(PixelAwareAdaptiveBottleneck, layers=[1,1,1,1], num_classes=10)
    params = make_resnet_params(kp, layers=[1, 1, 1, 1], num_classes=10)
    x = jax.random.normal(kx, (2, 3, 64, 64), F32)  # NCHW like PyTorch
    logits = resnet_forward(params, x)
    jax.block_until_ready(logits)
    assert logits.shape == (2, 10) and bool(jnp.all(jnp.isfinite(logits)))
    print("KERNEL_OK")
</pallas_src>

<mosaic_0001>
module attributes {stable_mosaic.version = 11 : i64} {
  func.func @_bmm_kernel(%arg0: i32, %arg1: i32, %arg2: i32, %arg3: i32, %arg4: memref<1x256x256xbf16, #tpu.memory_space<vmem>>, %arg5: memref<256x64xbf16, #tpu.memory_space<vmem>>, %arg6: memref<1x1x64xf32, #tpu.memory_space<vmem>>, %arg7: memref<1x1x64xf32, #tpu.memory_space<vmem>>, %arg8: memref<1x256x64xbf16, #tpu.memory_space<vmem>>, %arg9: memref<256x64xf32, #tpu.memory_space<vmem>>) attributes {dimension_semantics = [#tpu.dimension_semantics<parallel>, #tpu.dimension_semantics<parallel>, #tpu.dimension_semantics<parallel>, #tpu.dimension_semantics<arbitrary>], iteration_bounds = array<i64: 2, 4, 1, 1>, scalar_prefetch = 0 : i64, scratch_operands = 1 : i64, tpu.core_type = #tpu.core_type<tc>, window_params = [{transform_indices = @transform_0, window_bounds = array<i64: 1, 256, 256>}, {transform_indices = @transform_1, window_bounds = array<i64: 256, 64>}, {transform_indices = @transform_2, window_bounds = array<i64: 1, 1, 64>}, {transform_indices = @transform_3, window_bounds = array<i64: 1, 1, 64>}, {transform_indices = @transform_4, window_bounds = array<i64: 1, 256, 64>}]} {
    %c0_i32 = arith.constant 0 : i32
    %0 = arith.cmpi eq, %arg3, %c0_i32 : i32
    %1 = arith.extui %0 : i1 to i32
    %c0_i32_0 = arith.constant 0 : i32
    %2 = arith.cmpi ne, %1, %c0_i32_0 : i32
    scf.if %2 {
      %cst_11 = arith.constant 0.000000e+00 : f32
      %13 = vector.broadcast %cst_11 : f32 to vector<256x64xf32>
      %c0_12 = arith.constant 0 : index
      %c0_13 = arith.constant 0 : index
      %14 = vector.load %arg9[%c0_12, %c0_13] : memref<256x64xf32, #tpu.memory_space<vmem>>, vector<256x64xf32>
      tpu.vector_store %arg9[%c0_12, %c0_13], %13 {strides = array<i32>} : memref<256x64xf32, #tpu.memory_space<vmem>>, vector<256x64xf32>,
    } else {
    }
    %c0 = arith.constant 0 : index
    %c0_1 = arith.constant 0 : index
    %3 = vector.load %arg9[%c0, %c0_1] : memref<256x64xf32, #tpu.memory_space<vmem>>, vector<256x64xf32>
    %c0_2 = arith.constant 0 : index
    %c0_3 = arith.constant 0 : index
    %c0_4 = arith.constant 0 : index
    %4 = vector.load %arg4[%c0_2, %c0_3, %c0_4] : memref<1x256x256xbf16, #tpu.memory_space<vmem>>, vector<1x256x256xbf16>
    %5 = vector.shape_cast %4 : vector<1x256x256xbf16> to vector<256x256xbf16>
    %c0_5 = arith.constant 0 : index
    %c0_6 = arith.constant 0 : index
    %6 = vector.load %arg5[%c0_5, %c0_6] : memref<256x64xbf16, #tpu.memory_space<vmem>>, vector<256x64xbf16>
    %cst = arith.constant dense<0.000000e+00> : vector<256x64xf32>
    %7 = tpu.matmul %5, %6, %cst {dimension_numbers = #tpu.dot_dimension_numbers<[1], [0], [0], [1], [0, 0, 1, 1], [], []>} : vector<256x256xbf16>, vector<256x64xbf16>, vector<256x64xf32> -> vector<256x64xf32>
    %8 = arith.addf %3, %7 : vector<256x64xf32>
    %c0_7 = arith.constant 0 : index
    %c0_8 = arith.constant 0 : index
    %9 = vector.load %arg9[%c0_7, %c0_8] : memref<256x64xf32, #tpu.memory_space<vmem>>, vector<256x64xf32>
    tpu.vector_store %arg9[%c0_7, %c0_8], %8 {strides = array<i32>} : memref<256x64xf32, #tpu.memory_space<vmem>>, vector<256x64xf32>,
    %c0_i32_9 = arith.constant 0 : i32
    %10 = arith.cmpi eq, %arg3, %c0_i32_9 : i32
    %11 = arith.extui %10 : i1 to i32
    %c0_i32_10 = arith.constant 0 : i32
    %12 = arith.cmpi ne, %11, %c0_i32_10 : i32
    scf.if %12 {
      %c0_11 = arith.constant 0 : index
      %c0_12 = arith.constant 0 : index
      %13 = vector.load %arg9[%c0_11, %c0_12] : memref<256x64xf32, #tpu.memory_space<vmem>>, vector<256x64xf32>
      %c0_13 = arith.constant 0 : index
      %c0_14 = arith.constant 0 : index
      %c0_15 = arith.constant 0 : index
      %14 = vector.load %arg6[%c0_13, %c0_14, %c0_15] : memref<1x1x64xf32, #tpu.memory_space<vmem>>, vector<1x1x64xf32>
      %15 = vector.shape_cast %14 : vector<1x1x64xf32> to vector<1x64xf32>
      %16 = vector.broadcast %15 : vector<1x64xf32> to vector<256x64xf32>
      %17 = arith.mulf %13, %16 : vector<256x64xf32>
      %c0_16 = arith.constant 0 : index
      %c0_17 = arith.constant 0 : index
      %c0_18 = arith.constant 0 : index
      %18 = vector.load %arg7[%c0_16, %c0_17, %c0_18] : memref<1x1x64xf32, #tpu.memory_space<vmem>>, vector<1x1x64xf32>
      %19 = vector.shape_cast %18 : vector<1x1x64xf32> to vector<1x64xf32>
      %20 = vector.broadcast %19 : vector<1x64xf32> to vector<256x64xf32>
      %21 = arith.addf %17, %20 : vector<256x64xf32>
      %cst_19 = arith.constant 0.000000e+00 : f32
      %22 = vector.broadcast %cst_19 : f32 to vector<256x64xf32>
      %23 = arith.maximumf %21, %22 : vector<256x64xf32>
      %24 = arith.truncf %23 : vector<256x64xf32> to vector<256x64xbf16>
      %c0_20 = arith.constant 0 : index
      %c0_21 = arith.constant 0 : index
      %c0_22 = arith.constant 0 : index
      %25 = vector.load %arg8[%c0_20, %c0_21, %c0_22] : memref<1x256x64xbf16, #tpu.memory_space<vmem>>, vector<1x256x64xbf16>
      %26 = vector.shape_cast %25 : vector<1x256x64xbf16> to vector<256x64xbf16>
      %27 = vector.shape_cast %24 : vector<256x64xbf16> to vector<1x256x64xbf16>
      tpu.vector_store %arg8[%c0_20, %c0_21, %c0_22], %27 {strides = array<i32>} : memref<1x256x64xbf16, #tpu.memory_space<vmem>>, vector<1x256x64xbf16>,
    } else {
    }
    return
  }
  func.func @transform_0(%arg0: i32, %arg1: i32, %arg2: i32, %arg3: i32) -> (i32, i32, i32) {
    %c0_i32 = arith.constant 0 : i32
    return %arg0, %arg1, %arg3 : i32, i32, i32
  }
  func.func @transform_1(%arg0: i32, %arg1: i32, %arg2: i32, %arg3: i32) -> (i32, i32) {
    %c0_i32 = arith.constant 0 : i32
    return %arg3, %arg2 : i32, i32
  }
  func.func @transform_2(%arg0: i32, %arg1: i32, %arg2: i32, %arg3: i32) -> (i32, i32, i32) {
    %c0_i32 = arith.constant 0 : i32
    %c0_i32_0 = arith.constant 0 : i32
    %c0_i32_1 = arith.constant 0 : i32
    return %c0_i32, %c0_i32_0, %arg2 : i32, i32, i32
  }
  func.func @transform_3(%arg0: i32, %arg1: i32, %arg2: i32, %arg3: i32) -> (i32, i32, i32) {
    %c0_i32 = arith.constant 0 : i32
    %c0_i32_0 = arith.constant 0 : i32
    %c0_i32_1 = arith.constant 0 : i32
    return %c0_i32, %c0_i32_0, %arg2 : i32, i32, i32
  }
  func.func @transform_4(%arg0: i32, %arg1: i32, %arg2: i32, %arg3: i32) -> (i32, i32, i32) {
    %c0_i32 = arith.constant 0 : i32
    return %arg0, %arg1, %arg2 : i32, i32, i32
  }
}

</mosaic_0001>

<llo_original>
// kernel: tpu_custom_call.1
$region0: #{tpu_custom_call.1}
  #allocation0 [shape = 'u32[]', space=smem, size = 0x4, offset = 0x4, fixed_abs, tag = 'smem constant byte address 0x4 - core index']
  #allocation1 [shape = 'u32[144,128]{1,0:T(1,128)}', space=vmem, size = 0x12000, scoped, tag = 'internal scratch']
  #allocation2 [shape = 'f32[256,64]{1,0:T(8,128)}', space=vmem, size = 0x20000, scoped, tag = 'scratch operand']
  %s0 = inlined_call_operand.hbm [shape: bf16[2,1024,256], index: 0, kind: input, shape index: {}]
  %s1 = inlined_call_operand.vmem [shape: bf16[256,64], index: 1, kind: input, shape index: {}]
  %s2 = inlined_call_operand.vmem [shape: f32[1,1,64], index: 2, kind: input, shape index: {}]
  %s3 = inlined_call_operand.vmem [shape: f32[1,1,64], index: 3, kind: input, shape index: {}]
  %s4 = inlined_call_operand.vmem [shape: bf16[2,1024,64], index: 4, kind: output, shape index: {}]
  %s5 = sld [smem:[#allocation0]]
  $region61: #{tpu_custom_call.1} parent=0
    _
  %s7 = ssub.s32 1, %s5
  %s8 = scalar_select 0, %s7, %s5
  $region1: #{tpu_custom_call.1} parent=0
    #allocation3 [shape = 'u8[262144]{0}', space=vmem, size = 0x40000, scoped, tag = 'input window, operand 0']
    #allocation4 [shape = 's32[2]{0}', space=sflag, size = 0x8, scoped, tag = 'scoped memory for tpu_custom_call.1']
    %9 = vsyncpa [#allocation4], 0
    %s10 = scalar_lea.sflag [#allocation4], 1
    %11 = vsyncpa %s10, 0
    loop: start=0, step=1, limit=10
    $region2: #{tpu_custom_call.1} parent=1 // loop_pre_header
      _
    $region3: #{tpu_custom_call.1} parent=1 // loop_header
      %s13 = sphi 0, %s17
      %p14 = scmp.ge.s32.totalorder %s13, 10
      %s20 = sphi 0, %s46
      %s21 = sphi 0, %s42
      %s22 = sphi 0, %s38
      %s23 = sphi 0, %s34
      %s24 = sphi 0, %s20
      %s25 = sphi 0, %s21
      %s26 = sphi 0, %s22
      %s27 = sphi 0, %s23
      %s28 = sphi 0, %s24
      %s29 = sphi 0, %s25
      %s30 = sphi 0, %s26
      %s31 = sphi 0, %s27
      %s53 = sphi 0, %s55
      %s56 = sphi 0, %s53
      %s57 = sphi 0, %s56
      %s73 = sphi 0, %s57
      %s81 = sphi 0, %s83
      %s84 = sphi 0, %s81
      %s85 = sphi 0, %s84
      %s101 = sphi 0, %s85
      %s107 = sphi 0, %s109
      %s110 = sphi 0, %s107
      %s111 = sphi 0, %s110
      %s127 = sphi 0, %s111
      %s133 = sphi 0, %s135
      %s136 = sphi 0, %s133
      %s137 = sphi 0, %s136
      %s153 = sphi 0, %s137
      %s163 = sphi 0, %s165
      %s166 = sphi 0, %s163
      %s167 = sphi 0, %s166
      %s183 = sphi 0, %s167
    $region4: #{tpu_custom_call.1} parent=1 // loop_header_branch
      %16 = sbr.rel (%p14) target = $region8
    $region5: #{tpu_custom_call.1} parent=1 // loop_body
      %s18 = ssub.s32 %s13, 1
      %s19 = ssub.s32 %s13, 2
      %s32 = sadd.s32 1, %s23
      %p33 = scmp.ge.s32.totalorder %s32, 1
      %s34 = scalar_select %p33, 0, %s32
      %s35 = sadd.s32 1, %s22
      %s36 = scalar_select %p33, %s35, %s22
      %p37 = scmp.ge.s32.totalorder %s36, 1
      %s38 = scalar_select %p37, 0, %s36
      %s39 = sadd.s32 1, %s21
      %s40 = scalar_select %p37, %s39, %s21
      %p41 = scmp.ge.s32.totalorder %s40, 4
      %s42 = scalar_select %p41, 0, %s40
      %s43 = sadd.s32 1, %s20
      %s44 = scalar_select %p41, %s43, %s20
      %p45 = scmp.ge.s32.totalorder %s44, 2
      %s46 = scalar_select %p45, 0, %s44
      %s47 = ssub.s32 %s20, %s46
      %s48 = ssub.s32 %s21, %s42
      %s49 = sor.u32 %s47, %s48
      %s50 = ssub.s32 %s23, %s34
      %s51 = sor.u32 %s49, %s50
      %p52 = scmp.eq.s32.totalorder %s51, 0
      %s54 = sadd.s32 %s53, 1
      %s55 = scalar_select %p52, %s53, %s54
      %p58 = pneg %p52
      %p59 = scmp.eq.s32.totalorder %s13, 7
      %p60 = por %p58, %p59
      %p61 = scmp.ne.s32.totalorder %s53, %s56
      %p62 = scmp.eq.s32.totalorder %s13, 0
      %p63 = por %p61, %p62
      %p64 = scmp.ne.s32.totalorder %s53, %s56
      %p65 = scmp.eq.s32.totalorder %s18, 7
      %p66 = por %p64, %p65
      %p67 = scmp.ne.s32.totalorder %s56, %s57
      %p68 = scmp.eq.s32.totalorder %s18, 0
      %p69 = por %p67, %p68
      %p70 = scmp.ne.s32.totalorder %s56, %s57
      %p71 = scmp.eq.s32.totalorder %s19, 7
      %p72 = por %p70, %p71
      %p74 = scmp.ne.s32.totalorder %s57, %s73
      %p75 = scmp.eq.s32.totalorder %s19, 0
      %p76 = por %p74, %p75
      %s77 = ssub.s32 %s23, %s34
      %s78 = ssub.s32 %s22, %s38
      %s79 = sor.u32 %s77, %s78
      %p80 = scmp.eq.s32.totalorder %s79, 0
      %s82 = sadd.s32 %s81, 1
      %s83 = scalar_select %p80, %s81, %s82
      %p86 = pneg %p80
      %p87 = scmp.eq.s32.totalorder %s13, 7
      %p88 = por %p86, %p87
      %p89 = scmp.ne.s32.totalorder %s81, %s84
      %p90 = scmp.eq.s32.totalorder %s13, 0
      %p91 = por %p89, %p90
      %p92 = scmp.ne.s32.totalorder %s81, %s84
      %p93 = scmp.eq.s32.totalorder %s18, 7
      %p94 = por %p92, %p93
      %p95 = scmp.ne.s32.totalorder %s84, %s85
      %p96 = scmp.eq.s32.totalorder %s18, 0
      %p97 = por %p95, %p96
      %p98 = scmp.ne.s32.totalorder %s84, %s85
      %p99 = scmp.eq.s32.totalorder %s19, 7
      %p100 = por %p98, %p99
      %p102 = scmp.ne.s32.totalorder %s85, %s101
      %p103 = scmp.eq.s32.totalorder %s19, 0
      %p104 = por %p102, %p103
      %s105 = ssub.s32 %s22, %s38
      %p106 = scmp.eq.s32.totalorder %s105, 0
      %s108 = sadd.s32 %s107, 1
      %s109 = scalar_select %p106, %s107, %s108
      %p112 = pneg %p106
      %p113 = scmp.eq.s32.totalorder %s13, 7
      %p114 = por %p112, %p113
      %p115 = scmp.ne.s32.totalorder %s107, %s110
      %p116 = scmp.eq.s32.totalorder %s13, 0
      %p117 = por %p115, %p116
      %p118 = scmp.ne.s32.totalorder %s107, %s110
      %p119 = scmp.eq.s32.totalorder %s18, 7
      %p120 = por %p118, %p119
      %p121 = scmp.ne.s32.totalorder %s110, %s111
      %p122 = scmp.eq.s32.totalorder %s18, 0
      %p123 = por %p121, %p122
      %p124 = scmp.ne.s32.totalorder %s110, %s111
      %p125 = scmp.eq.s32.totalorder %s19, 7
      %p126 = por %p124, %p125
      %p128 = scmp.ne.s32.totalorder %s111, %s127
      %p129 = scmp.eq.s32.totalorder %s19, 0
      %p130 = por %p128, %p129
      %s131 = ssub.s32 %s22, %s38
      %p132 = scmp.eq.s32.totalorder %s131, 0
      %s134 = sadd.s32 %s133, 1
      %s135 = scalar_select %p132, %s133, %s134
      %p138 = pneg %p132
      %p139 = scmp.eq.s32.totalorder %s13, 7
      %p140 = por %p138, %p139
      %p141 = scmp.ne.s32.totalorder %s133, %s136
      %p142 = scmp.eq.s32.totalorder %s13, 0
      %p143 = por %p141, %p142
      %p144 = scmp.ne.s32.totalorder %s133, %s136
      %p145 = scmp.eq.s32.totalorder %s18, 7
      %p146 = por %p144, %p145
      %p147 = scmp.ne.s32.totalorder %s136, %s137
      %p148 = scmp.eq.s32.totalorder %s18, 0
      %p149 = por %p147, %p148
      %p150 = scmp.ne.s32.totalorder %s136, %s137
      %p151 = scmp.eq.s32.totalorder %s19, 7
      %p152 = por %p150, %p151
      %p154 = scmp.ne.s32.totalorder %s137, %s153
      %p155 = scmp.eq.s32.totalorder %s19, 0
      %p156 = por %p154, %p155
      %s157 = ssub.s32 %s20, %s46
      %s158 = ssub.s32 %s21, %s42
      %s159 = sor.u32 %s157, %s158
      %s160 = ssub.s32 %s22, %s38
      %s161 = sor.u32 %s159, %s160
      %p162 = scmp.eq.s32.totalorder %s161, 0
      %s164 = sadd.s32 %s163, 1
      %s165 = scalar_select %p162, %s163, %s164
      %p168 = pneg %p162
      %p169 = scmp.eq.s32.totalorder %s13, 7
      %p170 = por %p168, %p169
      %p171 = scmp.ne.s32.totalorder %s163, %s166
      %p172 = scmp.eq.s32.totalorder %s13, 0
      %p173 = por %p171, %p172
      %p174 = scmp.ne.s32.totalorder %s163, %s166
      %p175 = scmp.eq.s32.totalorder %s18, 7
      %p176 = por %p174, %p175
      %p177 = scmp.ne.s32.totalorder %s166, %s167
      %p178 = scmp.eq.s32.totalorder %s18, 0
      %p179 = por %p177, %p178
      %p180 = scmp.ne.s32.totalorder %s166, %s167
      %p181 = scmp.eq.s32.totalorder %s19, 7
      %p182 = por %p180, %p181
      %p184 = scmp.ne.s32.totalorder %s167, %s183
      %p185 = scmp.eq.s32.totalorder %s19, 0
      %p186 = por %p184, %p185
      %p187 = scmp.le.s32.totalorder 1, %s13
      %p188 = scmp.lt.s32.totalorder %s13, 9
      %p189 = pnand %p187, %p188
      %p190 = pneg %p189
      // Predicated region
      $region9: #{tpu_custom_call.1} parent=5 // pred_check
        _
      $region10: #{tpu_custom_call.1} parent=5 // pred_check_branch
        %192 = sbr.rel (%p189) target = $region12
      $region11: #{tpu_custom_call.1} parent=5 // pred_region
        %s193 = ssub.s32 %s13, 1
        // Predicated region
        $region13: #{tpu_custom_call.1} parent=11 // pred_check
          %p194 = pneg %p97
        $region14: #{tpu_custom_call.1} parent=11 // pred_check_branch
          %196 = sbr.rel (%p194) target = $region16
        $region15: #{tpu_custom_call.1} parent=11 // pred_region
          %s197 = smul.u32 32, %s27
          %p198 = scmp.lt.s32.totalorder %s197, 31
          %s199 = scalar_select %p198, %s197, 31
          %p200 = scmp.lt.s32.totalorder %s26, 0
          %s201 = scalar_select %p200, %s26, 0
          %s202 = sadd.s32 %s201, %s199
          %s203 = smul.addr %s202, 4
          %s204 = scalar_lea.vmem %s1, %s203
          %s205 = smul.u32 32, %s27
        $region16: #{tpu_custom_call.1} parent=11 // pred_fallthru
          _
        // Predicated region
        $region17: #{tpu_custom_call.1} parent=11 // pred_check
          %p206 = pneg %p123
        $region18: #{tpu_custom_call.1} parent=11 // pred_check_branch
          %208 = sbr.rel (%p206) target = $region20
        $region19: #{tpu_custom_call.1} parent=11 // pred_region
          %p209 = scmp.lt.s32.totalorder %s26, 0
          %s210 = scalar_select %p209, %s26, 0
          %s211 = scalar_lea.vmem %s2, %s210
        $region20: #{tpu_custom_call.1} parent=11 // pred_fallthru
          _
        // Predicated region
        $region21: #{tpu_custom_call.1} parent=11 // pred_check
          %p212 = pneg %p149
        $region22: #{tpu_custom_call.1} parent=11 // pred_check_branch
          %214 = sbr.rel (%p212) target = $region24
        $region23: #{tpu_custom_call.1} parent=11 // pred_region
          %p215 = scmp.lt.s32.totalorder %s26, 0
          %s216 = scalar_select %p215, %s26, 0
          %s217 = scalar_lea.vmem %s3, %s216
        $region24: #{tpu_custom_call.1} parent=11 // pred_fallthru
          _
      $region12: #{tpu_custom_call.1} parent=5 // pred_fallthru
        _
      %p218 = scmp.lt.s32.totalorder %s13, 8
      // Predicated region
      $region25: #{tpu_custom_call.1} parent=5 // pred_check
        %p219 = pneg %p218
      $region26: #{tpu_custom_call.1} parent=5 // pred_check_branch
        %221 = sbr.rel (%p219) target = $region28
      $region27: #{tpu_custom_call.1} parent=5 // pred_region
        // Predicated region
        $region29: #{tpu_custom_call.1} parent=27 // pred_check
          %p222 = pneg %p63
        $region30: #{tpu_custom_call.1} parent=27 // pred_check_branch
          %224 = sbr.rel (%p222) target = $region32
        $region31: #{tpu_custom_call.1} parent=27 // pred_region
          %s225 = sand.u32 %s53, 1
          %s226 = scalar_lea.sflag [#allocation4], %s225
          %s227 = sand.u32 %s53, 1
          %s228 = smul.addr %s227, 256
          %s229 = scalar_lea.vmem [#allocation3], %s228
          %s230 = smul.u32 32, %s21
          %s231 = smul.u32 2, %s23
          %s233 = ssub.s32 4096, 4096
          %234 = vsyncadd %s226, %s233
          %s235 = smul.addr %s230, 2
          %s236 = sadd.s32 %s231, %s235
          %s237 = smul.addr %s20, 256
          %s238 = sadd.s32 %s236, %s237
          %s239 = smul.addr %s238, 64
          %s240 = scalar_lea.hbm %s0, %s239
          %s241 = sshll.u32 %s229, 4
          %s242 = int_to_ptr.vmem [resolvable:$true] %s241
          %247 = dma.hbm_to_vmem [thread:$0]  %s240, 4096, %s242, %s226, 128, 128, 8
        $region32: #{tpu_custom_call.1} parent=27 // pred_fallthru
          _
      $region28: #{tpu_custom_call.1} parent=5 // pred_fallthru
        _
      %p248 = scmp.le.s32.totalorder 1, %s13
      %p249 = scmp.lt.s32.totalorder %s13, 9
      %p250 = pnand %p248, %p249
      %p251 = pneg %p250
      // Predicated region
      $region33: #{tpu_custom_call.1} parent=5 // pred_check
        _
      $region34: #{tpu_custom_call.1} parent=5 // pred_check_branch
        %253 = sbr.rel (%p250) target = $region36
      $region35: #{tpu_custom_call.1} parent=5 // pred_region
        %s254 = ssub.s32 %s13, 1
        %s255 = sand.u32 %s56, 1
        %s256 = scalar_lea.sflag [#allocation4], %s255
        %s257 = sand.u32 %s56, 1
        %s258 = smul.addr %s257, 256
        %s259 = scalar_lea.vmem [#allocation3], %s258
        // Predicated region
        $region37: #{tpu_custom_call.1} parent=35 // pred_check
          %p260 = pneg %p69
        $region38: #{tpu_custom_call.1} parent=35 // pred_check_branch
          %262 = sbr.rel (%p260) target = $region40
        $region39: #{tpu_custom_call.1} parent=35 // pred_region
          %263 = dma.done %s256, 4096
        $region40: #{tpu_custom_call.1} parent=35 // pred_fallthru
          _
        %s264 = sand.u32 %s56, 1
        %s265 = scalar_lea.sflag [#allocation4], %s264
        %s266 = sand.u32 %s56, 1
        %s267 = smul.addr %s266, 256
        %s268 = scalar_lea.vmem [#allocation3], %s267
        %p269 = pneg %p69
        %p270 = pneg %p66
        %s271 = smul.u32 32, %s27
        %p272 = scmp.lt.s32.totalorder %s271, 31
        %s273 = scalar_select %p272, %s271, 31
        %p274 = scmp.lt.s32.totalorder %s26, 0
        %s275 = scalar_select %p274, %s26, 0
        %s276 = sadd.s32 %s275, %s273
        %s277 = smul.addr %s276, 4
        %s278 = scalar_lea.vmem %s1, %s277
        %p279 = pneg %p97
        %p280 = pneg %p94
        %p281 = scmp.lt.s32.totalorder %s26, 0
        %s282 = scalar_select %p281, %s26, 0
        %s283 = scalar_lea.vmem %s2, %s282
        %p284 = pneg %p123
        %p285 = pneg %p120
        %p286 = scmp.lt.s32.totalorder %s26, 0
        %s287 = scalar_select %p286, %s26, 0
        %s288 = scalar_lea.vmem %s3, %s287
        %p289 = pneg %p149
        %p290 = pneg %p146
        %p291 = pneg %p179
        %p292 = pneg %p176
        %s293 = smul.u32 32, %s25
        %p294 = scmp.lt.s32.totalorder %s24, 1
        %s295 = scalar_select %p294, %s24, 1
        %p296 = scmp.lt.s32.totalorder %s293, 127
        %s297 = scalar_select %p296, %s293, 127
        %p298 = scmp.lt.s32.totalorder %s26, 0
        %s299 = scalar_select %p298, %s26, 0
        %s300 = sadd.s32 %s299, %s297
        %s301 = smul.addr %s295, 128
        %s302 = sadd.s32 %s300, %s301
        %s303 = smul.addr %s302, 4
        %s304 = scalar_lea.vmem %s4, %s303
        %s305 = smul.u32 32, %s25
        %s306 = smul.u32 2, %s27
        %s307 = smul.u32 32, %s27
        %p308 = scmp.lt.s32.totalorder %s307, 31
        %s309 = scalar_select %p308, %s307, 31
        %p310 = scmp.lt.s32.totalorder %s26, 0
        %s311 = scalar_select %p310, %s26, 0
        %s312 = sadd.s32 %s311, %s309
        %s313 = smul.addr %s312, 4
        %s314 = scalar_lea.vmem %s1, %s313
        %s315 = smul.u32 32, %s27
        %p316 = scmp.lt.s32.totalorder %s26, 0
        %s317 = scalar_select %p316, %s26, 0
        %s318 = scalar_lea.vmem %s2, %s317
        %p319 = scmp.lt.s32.totalorder %s26, 0
        %s320 = scalar_select %p319, %s26, 0
        %s321 = scalar_lea.vmem %s3, %s320
        %s322 = smul.u32 32, %s25
        %p323 = scmp.lt.s32.totalorder %s24, 1
        %s324 = scalar_select %p323, %s24, 1
        %p325 = scmp.lt.s32.totalorder %s322, 127
        %s326 = scalar_select %p325, %s322, 127
        %p327 = scmp.lt.s32.totalorder %s26, 0
        %s328 = scalar_select %p327, %s26, 0
        %s329 = sadd.s32 %s328, %s326
        %s330 = smul.addr %s324, 128
        %s331 = sadd.s32 %s329, %s330
        %s332 = smul.addr %s331, 4
        %s333 = scalar_lea.vmem %s4, %s332
        %s334 = smul.u32 32, %s25
        %p336 = scmp.eq.s32.totalorder %s27, 0
        // Predicated region
        $region41: #{tpu_custom_call.1} parent=35 // pred_check
          %p337 = pneg %p336
        $region42: #{tpu_custom_call.1} parent=35 // pred_check_branch
          %339 = sbr.rel (%p337) target = $region44
        $region43: #{tpu_custom_call.1} parent=35 // pred_region
          %vm340 = vcmask 523264
          %341 = vst.msk [vmem:[#allocation2] sm:$0xff] %vm340, 0.0
          %342 = vst.msk [vmem:[#allocation2 + $0x8] sm:$0xff] %vm340, 0.0
          %343 = vst.msk [vmem:[#allocation2 + $0x10] sm:$0xff] %vm340, 0.0
          %344 = vst.msk [vmem:[#allocation2 + $0x18] sm:$0xff] %vm340, 0.0
          %345 = vst.msk [vmem:[#allocation2 + $0x20] sm:$0xff] %vm340, 0.0
          %346 = vst.msk [vmem:[#allocation2 + $0x28] sm:$0xff] %vm340, 0.0
          %347 = vst.msk [vmem:[#allocation2 + $0x30] sm:$0xff] %vm340, 0.0
          %348 = vst.msk [vmem:[#allocation2 + $0x38] sm:$0xff] %vm340, 0.0
          %349 = vst.msk [vmem:[#allocation2 + $0x40] sm:$0xff] %vm340, 0.0
          %350 = vst.msk [vmem:[#allocation2 + $0x48] sm:$0xff] %vm340, 0.0
          %351 = vst.msk [vmem:[#allocation2 + $0x50] sm:$0xff] %vm340, 0.0
          %352 = vst.msk [vmem:[#allocation2 + $0x58] sm:$0xff] %vm340, 0.0
          %353 = vst.msk [vmem:[#allocation2 + $0x60] sm:$0xff] %vm340, 0.0
          %354 = vst.msk [vmem:[#allocation2 + $0x68] sm:$0xff] %vm340, 0.0
          %355 = vst.msk [vmem:[#allocation2 + $0x70] sm:$0xff] %vm340, 0.0
          %356 = vst.msk [vmem:[#allocation2 + $0x78] sm:$0xff] %vm340, 0.0
          %357 = vst.msk [vmem:[#allocation2 + $0x80] sm:$0xff] %vm340, 0.0
          %358 = vst.msk [vmem:[#allocation2 + $0x88] sm:$0xff] %vm340, 0.0
          %359 = vst.msk [vmem:[#allocation2 + $0x90] sm:$0xff] %vm340, 0.0
          %360 = vst.msk [vmem:[#allocation2 + $0x98] sm:$0xff] %vm340, 0.0
          %361 = vst.msk [vmem:[#allocation2 + $0xa0] sm:$0xff] %vm340, 0.0
          %362 = vst.msk [vmem:[#allocation2 + $0xa8] sm:$0xff] %vm340, 0.0
          %363 = vst.msk [vmem:[#allocation2 + $0xb0] sm:$0xff] %vm340, 0.0
          %364 = vst.msk [vmem:[#allocation2 + $0xb8] sm:$0xff] %vm340, 0.0
          %365 = vst.msk [vmem:[#allocation2 + $0xc0] sm:$0xff] %vm340, 0.0
          %366 = vst.msk [vmem:[#allocation2 + $0xc8] sm:$0xff] %vm340, 0.0
          %367 = vst.msk [vmem:[#allocation2 + $0xd0] sm:$0xff] %vm340, 0.0
          %368 = vst.msk [vmem:[#allocation2 + $0xd8] sm:$0xff] %vm340, 0.0
          %369 = vst.msk [vmem:[#allocation2 + $0xe0] sm:$0xff] %vm340, 0.0
          %370 = vst.msk [vmem:[#allocation2 + $0xe8] sm:$0xff] %vm340, 0.0
          %371 = vst.msk [vmem:[#allocation2 + $0xf0] sm:$0xff] %vm340, 0.0
          %372 = vst.msk [vmem:[#allocation2 + $0xf8] sm:$0xff] %vm340, 0.0
        $region44: #{tpu_custom_call.1} parent=35 // pred_fallthru
          _
        %v373 = vld [vmem:[#allocation2] sm:$0xff]
        %v374 = vld [vmem:[#allocation2 + $0x8] sm:$0xff]
        %v375 = vld [vmem:[#allocation2 + $0x10] sm:$0xff]
        %v376 = vld [vmem:[#allocation2 + $0x18] sm:$0xff]
        %v377 = vld [vmem:[#allocation2 + $0x20] sm:$0xff]
        %v378 = vld [vmem:[#allocation2 + $0x28] sm:$0xff]
        %v379 = vld [vmem:[#allocation2 + $0x30] sm:$0xff]
        %v380 = vld [vmem:[#allocation2 + $0x38] sm:$0xff]
        %v381 = vld [vmem:[#allocation2 + $0x40] sm:$0xff]
        %v382 = vld [vmem:[#allocation2 + $0x48] sm:$0xff]
        %v383 = vld [vmem:[#allocation2 + $0x50] sm:$0xff]
        %v384 = vld [vmem:[#allocation2 + $0x58] sm:$0xff]
        %v385 = vld [vmem:[#allocation2 + $0x60] sm:$0xff]
        %v386 = vld [vmem:[#allocation2 + $0x68] sm:$0xff]
        %v387 = vld [vmem:[#allocation2 + $0x70] sm:$0xff]
        %v388 = vld [vmem:[#allocation2 + $0x78] sm:$0xff]
        %v389 = vld [vmem:[#allocation2 + $0x80] sm:$0xff]
        %v390 = vld [vmem:[#allocation2 + $0x88] sm:$0xff]
        %v391 = vld [vmem:[#allocation2 + $0x90] sm:$0xff]
        %v392 = vld [vmem:[#allocation2 + $0x98] sm:$0xff]
        %v393 = vld [vmem:[#allocation2 + $0xa0] sm:$0xff]
        %v394 = vld [vmem:[#allocation2 + $0xa8] sm:$0xff]
        %v395 = vld [vmem:[#allocation2 + $0xb0] sm:$0xff]
        %v396 = vld [vmem:[#allocation2 + $0xb8] sm:$0xff]
        %v397 = vld [vmem:[#allocation2 + $0xc0] sm:$0xff]
        %v398 = vld [vmem:[#allocation2 + $0xc8] sm:$0xff]
        %v399 = vld [vmem:[#allocation2 + $0xd0] sm:$0xff]
        %v400 = vld [vmem:[#allocation2 + $0xd8] sm:$0xff]
        %v401 = vld [vmem:[#allocation2 + $0xe0] sm:$0xff]
        %v402 = vld [vmem:[#allocation2 + $0xe8] sm:$0xff]
        %v403 = vld [vmem:[#allocation2 + $0xf0] sm:$0xff]
        %v404 = vld [vmem:[#allocation2 + $0xf8] sm:$0xff]
        %v405 = vld [vmem:[%s259] sm:$0xff]
        %v406 = vld [vmem:[%s259 + $0x8] sm:$0xff]
        %v407 = vld [vmem:[%s259 + $0x10] sm:$0xff]
        %v408 = vld [vmem:[%s259 + $0x18] sm:$0xff]
        %v409 = vld [vmem:[%s259 + $0x20] sm:$0xff]
        %v410 = vld [vmem:[%s259 + $0x28] sm:$0xff]
        %v411 = vld [vmem:[%s259 + $0x30] sm:$0xff]
        %v412 = vld [vmem:[%s259 + $0x38] sm:$0xff]
        %v413 = vld [vmem:[%s259 + $0x40] sm:$0xff]
        %v414 = vld [vmem:[%s259 + $0x48] sm:$0xff]
        %v415 = vld [vmem:[%s259 + $0x50] sm:$0xff]
        %v416 = vld [vmem:[%s259 + $0x58] sm:$0xff]
        %v417 = vld [vmem:[%s259 + $0x60] sm:$0xff]
        %v418 = vld [vmem:[%s259 + $0x68] sm:$0xff]
        %v419 = vld [vmem:[%s259 + $0x70] sm:$0xff]
        %v420 = vld [vmem:[%s259 + $0x78] sm:$0xff]
        %v421 = vld [vmem:[%s259 + $0x80] sm:$0xff]
        %v422 = vld [vmem:[%s259 + $0x88] sm:$0xff]
        %v423 = vld [vmem:[%s259 + $0x90] sm:$0xff]
        %v424 = vld [vmem:[%s259 + $0x98] sm:$0xff]
        %v425 = vld [vmem:[%s259 + $0xa0] sm:$0xff]
        %v426 = vld [vmem:[%s259 + $0xa8] sm:$0xff]
        %v427 = vld [vmem:[%s259 + $0xb0] sm:$0xff]
        %v428 = vld [vmem:[%s259 + $0xb8] sm:$0xff]
        %v429 = vld [vmem:[%s259 + $0xc0] sm:$0xff]
        %v430 = vld [vmem:[%s259 + $0xc8] sm:$0xff]
        %v431 = vld [vmem:[%s259 + $0xd0] sm:$0xff]
        %v432 = vld [vmem:[%s259 + $0xd8] sm:$0xff]
        %v433 = vld [vmem:[%s259 + $0xe0] sm:$0xff]
        %v434 = vld [vmem:[%s259 + $0xe8] sm:$0xff]
        %v435 = vld [vmem:[%s259 + $0xf0] sm:$0xff]
        %v436 = vld [vmem:[%s259 + $0xf8] sm:$0xff]
        %v437 = vld [vmem:[%s314] sm:$0xf]
        %v438 = vld [vmem:[%s314 + $0x4] sm:$0xf]
        %v439 = vld [vmem:[%s314 + $0x8] sm:$0xf]
        %v440 = vld [vmem:[%s314 + $0xc] sm:$0xf]
        %v441 = vld [vmem:[%s314 + $0x10] sm:$0xf]
        %v442 = vld [vmem:[%s314 + $0x14] sm:$0xf]
        %v443 = vld [vmem:[%s314 + $0x18] sm:$0xf]
        %v444 = vld [vmem:[%s314 + $0x1c] sm:$0xf]
        %v445 = vld [vmem:[%s314 + $0x20] sm:$0xf]
        %v446 = vld [vmem:[%s314 + $0x24] sm:$0xf]
        %v447 = vld [vmem:[%s314 + $0x28] sm:$0xf]
        %v448 = vld [vmem:[%s314 + $0x2c] sm:$0xf]
        %v449 = vld [vmem:[%s314 + $0x30] sm:$0xf]
        %v450 = vld [vmem:[%s314 + $0x34] sm:$0xf]
        %v451 = vld [vmem:[%s314 + $0x38] sm:$0xf]
        %v452 = vld [vmem:[%s314 + $0x3c] sm:$0xf]
        %v453 = vld [vmem:[%s314 + $0x40] sm:$0xf]
        %v454 = vld [vmem:[%s314 + $0x44] sm:$0xf]
        %v455 = vld [vmem:[%s314 + $0x48] sm:$0xf]
        %v456 = vld [vmem:[%s314 + $0x4c] sm:$0xf]
        %v457 = vld [vmem:[%s314 + $0x50] sm:$0xf]
        %v458 = vld [vmem:[%s314 + $0x54] sm:$0xf]
        %v459 = vld [vmem:[%s314 + $0x58] sm:$0xf]
        %v460 = vld [vmem:[%s314 + $0x5c] sm:$0xf]
        %v461 = vld [vmem:[%s314 + $0x60] sm:$0xf]
        %v462 = vld [vmem:[%s314 + $0x64] sm:$0xf]
        %v463 = vld [vmem:[%s314 + $0x68] sm:$0xf]
        %v464 = vld [vmem:[%s314 + $0x6c] sm:$0xf]
        %v465 = vld [vmem:[%s314 + $0x70] sm:$0xf]
        %v466 = vld [vmem:[%s314 + $0x74] sm:$0xf]
        %v467 = vld [vmem:[%s314 + $0x78] sm:$0xf]
        %v468 = vld [vmem:[%s314 + $0x7c] sm:$0xf]
        %v501 = vunpack.c.l.b16 %v405
        %v502 = vunpack.c.h.b16 %v405
        %v503 = vunpack.c.l.b16 %v406
        %v504 = vunpack.c.h.b16 %v406
        %v505 = vunpack.c.l.b16 %v407
        %v506 = vunpack.c.h.b16 %v407
        %v507 = vunpack.c.l.b16 %v408
        %v508 = vunpack.c.h.b16 %v408
        %v509 = vunpack.c.l.b16 %v409
        %v510 = vunpack.c.h.b16 %v409
        %v511 = vunpack.c.l.b16 %v410
        %v512 = vunpack.c.h.b16 %v410
        %v513 = vunpack.c.l.b16 %v411
        %v514 = vunpack.c.h.b16 %v411
        %v515 = vunpack.c.l.b16 %v412
        %v516 = vunpack.c.h.b16 %v412
        %v517 = vunpack.c.l.b16 %v413
        %v518 = vunpack.c.h.b16 %v413
        %v519 = vunpack.c.l.b16 %v414
        %v520 = vunpack.c.h.b16 %v414
        %v521 = vunpack.c.l.b16 %v415
        %v522 = vunpack.c.h.b16 %v415
        %v523 = vunpack.c.l.b16 %v416
        %v524 = vunpack.c.h.b16 %v416
        %v525 = vunpack.c.l.b16 %v417
        %v526 = vunpack.c.h.b16 %v417
        %v527 = vunpack.c.l.b16 %v418
        %v528 = vunpack.c.h.b16 %v418
        %v529 = vunpack.c.l.b16 %v419
        %v530 = vunpack.c.h.b16 %v419
        %v531 = vunpack.c.l.b16 %v420
        %v532 = vunpack.c.h.b16 %v420
        %v533 = vunpack.c.l.b16 %v421
        %v534 = vunpack.c.h.b16 %v421
        %v535 = vunpack.c.l.b16 %v422
        %v536 = vunpack.c.h.b16 %v422
        %v537 = vunpack.c.l.b16 %v423
        %v538 = vunpack.c.h.b16 %v423
        %v539 = vunpack.c.l.b16 %v424
        %v540 = vunpack.c.h.b16 %v424
        %v541 = vunpack.c.l.b16 %v425
        %v542 = vunpack.c.h.b16 %v425
        %v543 = vunpack.c.l.b16 %v426
        %v544 = vunpack.c.h.b16 %v426
        %v545 = vunpack.c.l.b16 %v427
        %v546 = vunpack.c.h.b16 %v427
        %v547 = vunpack.c.l.b16 %v428
        %v548 = vunpack.c.h.b16 %v428
        %v549 = vunpack.c.l.b16 %v429
        %v550 = vunpack.c.h.b16 %v429
        %v551 = vunpack.c.l.b16 %v430
        %v552 = vunpack.c.h.b16 %v430
        %v553 = vunpack.c.l.b16 %v431
        %v554 = vunpack.c.h.b16 %v431
        %v555 = vunpack.c.l.b16 %v432
        %v556 = vunpack.c.h.b16 %v432
        %v557 = vunpack.c.l.b16 %v433
        %v558 = vunpack.c.h.b16 %v433
        %v559 = vunpack.c.l.b16 %v434
        %v560 = vunpack.c.h.b16 %v434
        %v561 = vunpack.c.l.b16 %v435
        %v562 = vunpack.c.h.b16 %v435
        %v563 = vunpack.c.l.b16 %v436
        %v564 = vunpack.c.h.b16 %v436
        %v565 = vpack.c.b16 %v503, %v501
        %v566 = vpack.c.b16 %v504, %v502
        %v567 = vpack.c.b16 %v507, %v505
        %v568 = vpack.c.b16 %v508, %v506
        %v569 = vpack.c.b16 %v511, %v509
        %v570 = vpack.c.b16 %v512, %v510
        %v571 = vpack.c.b16 %v515, %v513
        %v572 = vpack.c.b16 %v516, %v514
        %v573 = vpack.c.b16 %v519, %v517
        %v574 = vpack.c.b16 %v520, %v518
        %v575 = vpack.c.b16 %v523, %v521
        %v576 = vpack.c.b16 %v524, %v522
        %v577 = vpack.c.b16 %v527, %v525
        %v578 = vpack.c.b16 %v528, %v526
        %v579 = vpack.c.b16 %v531, %v529
        %v580 = vpack.c.b16 %v532, %v530
        %v581 = vpack.c.b16 %v535, %v533
        %v582 = vpack.c.b16 %v536, %v534
        %v583 = vpack.c.b16 %v539, %v537
        %v584 = vpack.c.b16 %v540, %v538
        %v585 = vpack.c.b16 %v543, %v541
        %v586 = vpack.c.b16 %v544, %v542
        %v587 = vpack.c.b16 %v547, %v545
        %v588 = vpack.c.b16 %v548, %v546
        %v589 = vpack.c.b16 %v551, %v549
        %v590 = vpack.c.b16 %v552, %v550
        %v591 = vpack.c.b16 %v555, %v553
        %v592 = vpack.c.b16 %v556, %v554
        %v593 = vpack.c.b16 %v559, %v557
        %v594 = vpack.c.b16 %v560, %v558
        %v595 = vpack.c.b16 %v563, %v561
        %v596 = vpack.c.b16 %v564, %v562
        %v661 = vunpack.c.l.b16 %v437
        %v662 = vunpack.c.l.b16 %v438
        %v663 = vunpack.c.l.b16 %v439
        %v664 = vunpack.c.l.b16 %v440
        %v665 = vunpack.c.l.b16 %v441
        %v666 = vunpack.c.l.b16 %v442
        %v667 = vunpack.c.l.b16 %v443
        %v668 = vunpack.c.l.b16 %v444
        %v669 = vunpack.c.l.b16 %v445
        %v670 = vunpack.c.l.b16 %v446
        %v671 = vunpack.c.l.b16 %v447
        %v672 = vunpack.c.l.b16 %v448
        %v673 = vunpack.c.l.b16 %v449
        %v674 = vunpack.c.l.b16 %v450
        %v675 = vunpack.c.l.b16 %v451
        %v676 = vunpack.c.l.b16 %v452
        %v677 = vunpack.c.l.b16 %v453
        %v678 = vunpack.c.l.b16 %v454
        %v679 = vunpack.c.l.b16 %v455
        %v680 = vunpack.c.l.b16 %v456
        %v681 = vunpack.c.l.b16 %v457
        %v682 = vunpack.c.l.b16 %v458
        %v683 = vunpack.c.l.b16 %v459
        %v684 = vunpack.c.l.b16 %v460
        %v685 = vunpack.c.l.b16 %v461
        %v686 = vunpack.c.l.b16 %v462
        %v687 = vunpack.c.l.b16 %v463
        %v688 = vunpack.c.l.b16 %v464
        %v689 = vunpack.c.l.b16 %v465
        %v690 = vunpack.c.l.b16 %v466
        %v691 = vunpack.c.l.b16 %v467
        %v692 = vunpack.c.l.b16 %v468
        %v693 = vpack.c.b16 %v662, %v661
        %v694 = vpack.c.b16 %v664, %v663
        %v695 = vpack.c.b16 %v666, %v665
        %v696 = vpack.c.b16 %v668, %v667
        %v697 = vpack.c.b16 %v670, %v669
        %v698 = vpack.c.b16 %v672, %v671
        %v699 = vpack.c.b16 %v674, %v673
        %v700 = vpack.c.b16 %v676, %v675
        %v701 = vpack.c.b16 %v678, %v677
        %v702 = vpack.c.b16 %v680, %v679
        %v703 = vpack.c.b16 %v682, %v681
        %v704 = vpack.c.b16 %v684, %v683
        %v705 = vpack.c.b16 %v686, %v685
        %v706 = vpack.c.b16 %v688, %v687
        %v707 = vpack.c.b16 %v690, %v689
        %v708 = vpack.c.b16 %v692, %v691
        %725 = vmatprep.subr.bf16.mxu0 0
        %726 = vmatpush1.bf16.msra.mxu0 %v693
        %727 = vmatprep.subr.bf16.mxu0 0
        %728 = vmatpush1.bf16.msra.mxu0 %v694
        %729 = vmatprep.subr.bf16.mxu0 0
        %730 = vmatpush1.bf16.msra.mxu0 %v695
        %731 = vmatprep.subr.bf16.mxu0 0
        %732 = vmatpush1.bf16.msra.mxu0 %v696
        %733 = vmatprep.subr.bf16.mxu0 0
        %734 = vmatpush1.bf16.msra.mxu0 %v697
        %735 = vmatprep.subr.bf16.mxu0 0
        %736 = vmatpush1.bf16.msra.mxu0 %v698
        %737 = vmatprep.subr.bf16.mxu0 0
        %738 = vmatpush1.bf16.msra.mxu0 %v699
        %739 = vmatprep.subr.bf16.mxu0 0
        %740 = vmatpush1.bf16.msra.mxu0 %v700
        %741 = vmatprep.subr.bf16.mxu0 0
        %742 = vmatpush1.bf16.msra.mxu0 %v701
        %743 = vmatprep.subr.bf16.mxu0 0
        %744 = vmatpush1.bf16.msra.mxu0 %v702
        %745 = vmatprep.subr.bf16.mxu0 0
        %746 = vmatpush1.bf16.msra.mxu0 %v703
        %747 = vmatprep.subr.bf16.mxu0 0
        %748 = vmatpush1.bf16.msra.mxu0 %v704
        %749 = vmatprep.subr.bf16.mxu0 0
        %750 = vmatpush1.bf16.msra.mxu0 %v705
        %751 = vmatprep.subr.bf16.mxu0 0
        %752 = vmatpush1.bf16.msra.mxu0 %v706
        %753 = vmatprep.subr.bf16.mxu0 0
        %754 = vmatpush1.bf16.msra.mxu0 %v707
        %755 = vmatprep.subr.bf16.mxu0 0
        %756 = vmatpush1.bf16.msra.mxu0 %v708
        %757 = vmatprep.mubr.bf16.mxu0 %v566
        %758 = vmatmul.mubr.bf16.gmra.mrb[0].mxu0 %v565
        %v759 = vpop.f32.mrb[0].mxu0
        %v760 = vadd.f32 0.0, %v759
        %v761 = vpop.f32.mrb[0].mxu0
        %v762 = vpop.f32.mrb[0].mxu0
        %v763 = vadd.f32 0.0, %v762
        %v764 = vpop.f32.mrb[0].mxu0
        %765 = vmatprep.mubr.bf16.mxu0 %v568
        %766 = vmatmul.mubr.bf16.gmra.mrb[0].mxu0 %v567
        %v767 = vpop.f32.mrb[0].mxu0
        %v768 = vadd.f32 0.0, %v767
        %v769 = vpop.f32.mrb[0].mxu0
        %v770 = vpop.f32.mrb[0].mxu0
        %v771 = vadd.f32 0.0, %v770
        %v772 = vpop.f32.mrb[0].mxu0
        %773 = vmatprep.mubr.bf16.mxu0 %v570
        %774 = vmatmul.mubr.bf16.gmra.mrb[0].mxu0 %v569
        %v775 = vpop.f32.mrb[0].mxu0
        %v776 = vadd.f32 0.0, %v775
        %v777 = vpop.f32.mrb[0].mxu0
        %v778 = vpop.f32.mrb[0].mxu0
        %v779 = vadd.f32 0.0, %v778
        %v780 = vpop.f32.mrb[0].mxu0
        %781 = vmatprep.mubr.bf16.mxu0 %v572
        %782 = vmatmul.mubr.bf16.gmra.mrb[0].mxu0 %v571
        %v783 = vpop.f32.mrb[0].mxu0
        %v784 = vadd.f32 0.0, %v783
        %v785 = vpop.f32.mrb[0].mxu0
        %v786 = vpop.f32.mrb[0].mxu0
        %v787 = vadd.f32 0.0, %v786
        %v788 = vpop.f32.mrb[0].mxu0
        %789 = vmatprep.mubr.bf16.mxu0 %v574
        %790 = vmatmul.mubr.bf16.gmra.mrb[0].mxu0 %v573
        %v791 = vpop.f32.mrb[0].mxu0
        %v792 = vadd.f32 0.0, %v791
        %v793 = vpop.f32.mrb[0].mxu0
        %v794 = vpop.f32.mrb[0].mxu0
        %v795 = vadd.f32 0.0, %v794
        %v796 = vpop.f32.mrb[0].mxu0
        %797 = vmatprep.mubr.bf16.mxu0 %v576
        %798 = vmatmul.mubr.bf16.gmra.mrb[0].mxu0 %v575
        %v799 = vpop.f32.mrb[0].mxu0
        %v800 = vadd.f32 0.0, %v799
        %v801 = vpop.f32.mrb[0].mxu0
        %v802 = vpop.f32.mrb[0].mxu0
        %v803 = vadd.f32 0.0, %v802
        %v804 = vpop.f32.mrb[0].mxu0
        %805 = vmatprep.mubr.bf16.mxu0 %v578
        %806 = vmatmul.mubr.bf16.gmra.mrb[0].mxu0 %v577
        %v807 = vpop.f32.mrb[0].mxu0
        %v808 = vadd.f32 0.0, %v807
        %v809 = vpop.f32.mrb[0].mxu0
        %v810 = vpop.f32.mrb[0].mxu0
        %v811 = vadd.f32 0.0, %v810
        %v812 = vpop.f32.mrb[0].mxu0
        %813 = vmatprep.mubr.bf16.mxu0 %v580
        %814 = vmatmul.mubr.bf16.gmra.mrb[0].mxu0 %v579
        %v815 = vpop.f32.mrb[0].mxu0
        %v816 = vadd.f32 0.0, %v815
        %v817 = vpop.f32.mrb[0].mxu0
        %v818 = vpop.f32.mrb[0].mxu0
        %v819 = vadd.f32 0.0, %v818
        %v820 = vpop.f32.mrb[0].mxu0
        %821 = vmatprep.mubr.bf16.mxu0 %v582
        %822 = vmatmul.mubr.bf16.gmra.mrb[0].mxu0 %v581
        %v823 = vpop.f32.mrb[0].mxu0
        %v824 = vadd.f32 0.0, %v823
        %v825 = vpop.f32.mrb[0].mxu0
        %v826 = vpop.f32.mrb[0].mxu0
        %v827 = vadd.f32 0.0, %v826
        %v828 = vpop.f32.mrb[0].mxu0
        %829 = vmatprep.mubr.bf16.mxu0 %v584
        %830 = vmatmul.mubr.bf16.gmra.mrb[0].mxu0 %v583
        %v831 = vpop.f32.mrb[0].mxu0
        %v832 = vadd.f32 0.0, %v831
        %v833 = vpop.f32.mrb[0].mxu0
        %v834 = vpop.f32.mrb[0].mxu0
        %v835 = vadd.f32 0.0, %v834
        %v836 = vpop.f32.mrb[0].mxu0
        %837 = vmatprep.mubr.bf16.mxu0 %v586
        %838 = vmatmul.mubr.bf16.gmra.mrb[0].mxu0 %v585
        %v839 = vpop.f32.mrb[0].mxu0
        %v840 = vadd.f32 0.0, %v839
        %v841 = vpop.f32.mrb[0].mxu0
        %v842 = vpop.f32.mrb[0].mxu0
        %v843 = vadd.f32 0.0, %v842
        %v844 = vpop.f32.mrb[0].mxu0
        %845 = vmatprep.mubr.bf16.mxu0 %v588
        %846 = vmatmul.mubr.bf16.gmra.mrb[0].mxu0 %v587
        %v847 = vpop.f32.mrb[0].mxu0
        %v848 = vadd.f32 0.0, %v847
        %v849 = vpop.f32.mrb[0].mxu0
        %v850 = vpop.f32.mrb[0].mxu0
        %v851 = vadd.f32 0.0, %v850
        %v852 = vpop.f32.mrb[0].mxu0
        %853 = vmatprep.mubr.bf16.mxu0 %v590
        %854 = vmatmul.mubr.bf16.gmra.mrb[0].mxu0 %v589
        %v855 = vpop.f32.mrb[0].mxu0
        %v856 = vadd.f32 0.0, %v855
        %v857 = vpop.f32.mrb[0].mxu0
        %v858 = vpop.f32.mrb[0].mxu0
        %v859 = vadd.f32 0.0, %v858
        %v860 = vpop.f32.mrb[0].mxu0
        %861 = vmatprep.mubr.bf16.mxu0 %v592
        %862 = vmatmul.mubr.bf16.gmra.mrb[0].mxu0 %v591
        %v863 = vpop.f32.mrb[0].mxu0
        %v864 = vadd.f32 0.0, %v863
        %v865 = vpop.f32.mrb[0].mxu0
        %v866 = vpop.f32.mrb[0].mxu0
        %v867 = vadd.f32 0.0, %v866
        %v868 = vpop.f32.mrb[0].mxu0
        %869 = vmatprep.mubr.bf16.mxu0 %v594
        %870 = vmatmul.mubr.bf16.gmra.mrb[0].mxu0 %v593
        %v871 = vpop.f32.mrb[0].mxu0
        %v872 = vadd.f32 0.0, %v871
        %v873 = vpop.f32.mrb[0].mxu0
        %v874 = vpop.f32.mrb[0].mxu0
        %v875 = vadd.f32 0.0, %v874
        %v876 = vpop.f32.mrb[0].mxu0
        %877 = vmatprep.mubr.bf16.mxu0 %v596
        %878 = vmatmul.mubr.bf16.gmra.mrb[0].mxu0 %v595
        %v879 = vpop.f32.mrb[0].mxu0
        %v880 = vadd.f32 0.0, %v879
        %v881 = vpop.f32.mrb[0].mxu0
        %v882 = vpop.f32.mrb[0].mxu0
        %v883 = vadd.f32 0.0, %v882
        %v884 = vpop.f32.mrb[0].mxu0
        %885 = vdwg.mxu0
        %v886 = vadd.f32 %v373, %v760
        %v887 = vadd.f32 %v374, %v763
        %v888 = vadd.f32 %v375, %v768
        %v889 = vadd.f32 %v376, %v771
        %v890 = vadd.f32 %v377, %v776
        %v891 = vadd.f32 %v378, %v779
        %v892 = vadd.f32 %v379, %v784
        %v893 = vadd.f32 %v380, %v787
        %v894 = vadd.f32 %v381, %v792
        %v895 = vadd.f32 %v382, %v795
        %v896 = vadd.f32 %v383, %v800
        %v897 = vadd.f32 %v384, %v803
        %v898 = vadd.f32 %v385, %v808
        %v899 = vadd.f32 %v386, %v811
        %v900 = vadd.f32 %v387, %v816
        %v901 = vadd.f32 %v388, %v819
        %v902 = vadd.f32 %v389, %v824
        %v903 = vadd.f32 %v390, %v827
        %v904 = vadd.f32 %v391, %v832
        %v905 = vadd.f32 %v392, %v835
        %v906 = vadd.f32 %v393, %v840
        %v907 = vadd.f32 %v394, %v843
        %v908 = vadd.f32 %v395, %v848
        %v909 = vadd.f32 %v396, %v851
        %v910 = vadd.f32 %v397, %v856
        %v911 = vadd.f32 %v398, %v859
        %v912 = vadd.f32 %v399, %v864
        %v913 = vadd.f32 %v400, %v867
        %v914 = vadd.f32 %v401, %v872
        %v915 = vadd.f32 %v402, %v875
        %v916 = vadd.f32 %v403, %v880
        %v917 = vadd.f32 %v404, %v883
        %vm918 = vcmask 523264
        %919 = vst.msk [vmem:[#allocation2] sm:$0xff] %vm918, %v886
        %920 = vst.msk [vmem:[#allocation2 + $0x8] sm:$0xff] %vm918, %v887
        %921 = vst.msk [vmem:[#allocation2 + $0x10] sm:$0xff] %vm918, %v888
        %922 = vst.msk [vmem:[#allocation2 + $0x18] sm:$0xff] %vm918, %v889
        %923 = vst.msk [vmem:[#allocation2 + $0x20] sm:$0xff] %vm918, %v890
        %924 = vst.msk [vmem:[#allocation2 + $0x28] sm:$0xff] %vm918, %v891
        %925 = vst.msk [vmem:[#allocation2 + $0x30] sm:$0xff] %vm918, %v892
        %926 = vst.msk [vmem:[#allocation2 + $0x38] sm:$0xff] %vm918, %v893
        %927 = vst.msk [vmem:[#allocation2 + $0x40] sm:$0xff] %vm918, %v894
        %928 = vst.msk [vmem:[#allocation2 + $0x48] sm:$0xff] %vm918, %v895
        %929 = vst.msk [vmem:[#allocation2 + $0x50] sm:$0xff] %vm918, %v896
        %930 = vst.msk [vmem:[#allocation2 + $0x58] sm:$0xff] %vm918, %v897
        %931 = vst.msk [vmem:[#allocation2 + $0x60] sm:$0xff] %vm918, %v898
        %932 = vst.msk [vmem:[#allocation2 + $0x68] sm:$0xff] %vm918, %v899
        %933 = vst.msk [vmem:[#allocation2 + $0x70] sm:$0xff] %vm918, %v900
        %934 = vst.msk [vmem:[#allocation2 + $0x78] sm:$0xff] %vm918, %v901
        %935 = vst.msk [vmem:[#allocation2 + $0x80] sm:$0xff] %vm918, %v902
        %936 = vst.msk [vmem:[#allocation2 + $0x88] sm:$0xff] %vm918, %v903
        %937 = vst.msk [vmem:[#allocation2 + $0x90] sm:$0xff] %vm918, %v904
        %938 = vst.msk [vmem:[#allocation2 + $0x98] sm:$0xff] %vm918, %v905
        %939 = vst.msk [vmem:[#allocation2 + $0xa0] sm:$0xff] %vm918, %v906
        %940 = vst.msk [vmem:[#allocation2 + $0xa8] sm:$0xff] %vm918, %v907
        %941 = vst.msk [vmem:[#allocation2 + $0xb0] sm:$0xff] %vm918, %v908
        %942 = vst.msk [vmem:[#allocation2 + $0xb8] sm:$0xff] %vm918, %v909
        %943 = vst.msk [vmem:[#allocation2 + $0xc0] sm:$0xff] %vm918, %v910
        %944 = vst.msk [vmem:[#allocation2 + $0xc8] sm:$0xff] %vm918, %v911
        %945 = vst.msk [vmem:[#allocation2 + $0xd0] sm:$0xff] %vm918, %v912
        %946 = vst.msk [vmem:[#allocation2 + $0xd8] sm:$0xff] %vm918, %v913
        %947 = vst.msk [vmem:[#allocation2 + $0xe0] sm:$0xff] %vm918, %v914
        %948 = vst.msk [vmem:[#allocation2 + $0xe8] sm:$0xff] %vm918, %v915
        %949 = vst.msk [vmem:[#allocation2 + $0xf0] sm:$0xff] %vm918, %v916
        %950 = vst.msk [vmem:[#allocation2 + $0xf8] sm:$0xff] %vm918, %v917
        // Predicated region
        $region45: #{tpu_custom_call.1} parent=35 // pred_check
          %p951 = pneg %p336
        $region46: #{tpu_custom_call.1} parent=35 // pred_check_branch
          %953 = sbr.rel (%p951) target = $region48
        $region47: #{tpu_custom_call.1} parent=35 // pred_region
          %v954 = vld [vmem:[#allocation2] sm:$0xff]
          %v955 = vld [vmem:[#allocation2 + $0x8] sm:$0xff]
          %v956 = vld [vmem:[#allocation2 + $0x10] sm:$0xff]
          %v957 = vld [vmem:[#allocation2 + $0x18] sm:$0xff]
          %v958 = vld [vmem:[#allocation2 + $0x20] sm:$0xff]
          %v959 = vld [vmem:[#allocation2 + $0x28] sm:$0xff]
          %v960 = vld [vmem:[#allocation2 + $0x30] sm:$0xff]
          %v961 = vld [vmem:[#allocation2 + $0x38] sm:$0xff]
          %v962 = vld [vmem:[#allocation2 + $0x40] sm:$0xff]
          %v963 = vld [vmem:[#allocation2 + $0x48] sm:$0xff]
          %v964 = vld [vmem:[#allocation2 + $0x50] sm:$0xff]
          %v965 = vld [vmem:[#allocation2 + $0x58] sm:$0xff]
          %v966 = vld [vmem:[#allocation2 + $0x60] sm:$0xff]
          %v967 = vld [vmem:[#allocation2 + $0x68] sm:$0xff]
          %v968 = vld [vmem:[#allocation2 + $0x70] sm:$0xff]
          %v969 = vld [vmem:[#allocation2 + $0x78] sm:$0xff]
          %v970 = vld [vmem:[#allocation2 + $0x80] sm:$0xff]
          %v971 = vld [vmem:[#allocation2 + $0x88] sm:$0xff]
          %v972 = vld [vmem:[#allocation2 + $0x90] sm:$0xff]
          %v973 = vld [vmem:[#allocation2 + $0x98] sm:$0xff]
          %v974 = vld [vmem:[#allocation2 + $0xa0] sm:$0xff]
          %v975 = vld [vmem:[#allocation2 + $0xa8] sm:$0xff]
          %v976 = vld [vmem:[#allocation2 + $0xb0] sm:$0xff]
          %v977 = vld [vmem:[#allocation2 + $0xb8] sm:$0xff]
          %v978 = vld [vmem:[#allocation2 + $0xc0] sm:$0xff]
          %v979 = vld [vmem:[#allocation2 + $0xc8] sm:$0xff]
          %v980 = vld [vmem:[#allocation2 + $0xd0] sm:$0xff]
          %v981 = vld [vmem:[#allocation2 + $0xd8] sm:$0xff]
          %v982 = vld [vmem:[#allocation2 + $0xe0] sm:$0xff]
          %v983 = vld [vmem:[#allocation2 + $0xe8] sm:$0xff]
          %v984 = vld [vmem:[#allocation2 + $0xf0] sm:$0xff]
          %v985 = vld [vmem:[#allocation2 + $0xf8] sm:$0xff]
          %v986 = vld [vmem:[%s318] sm:$0x1]
          %v988 = vlaneseq
          %v989 = vshrl.u32 %v988, 7
          %v990 = vsub.s32 0, %v989
          %v991 = vrot.slane %v986, %v990
          %v993 = vmul.f32 %v954, %v991
          %v994 = vmul.f32 %v955, %v991
          %v995 = vmul.f32 %v956, %v991
          %v996 = vmul.f32 %v957, %v991
          %v997 = vmul.f32 %v958, %v991
          %v998 = vmul.f32 %v959, %v991
          %v999 = vmul.f32 %v960, %v991
          %v1000 = vmul.f32 %v961, %v991
          %v1001 = vmul.f32 %v962, %v991
          %v1002 = vmul.f32 %v963, %v991
          %v1003 = vmul.f32 %v964, %v991
          %v1004 = vmul.f32 %v965, %v991
          %v1005 = vmul.f32 %v966, %v991
          %v1006 = vmul.f32 %v967, %v991
          %v1007 = vmul.f32 %v968, %v991
          %v1008 = vmul.f32 %v969, %v991
          %v1009 = vmul.f32 %v970, %v991
          %v1010 = vmul.f32 %v971, %v991
          %v1011 = vmul.f32 %v972, %v991
          %v1012 = vmul.f32 %v973, %v991
          %v1013 = vmul.f32 %v974, %v991
          %v1014 = vmul.f32 %v975, %v991
          %v1015 = vmul.f32 %v976, %v991
          %v1016 = vmul.f32 %v977, %v991
          %v1017 = vmul.f32 %v978, %v991
          %v1018 = vmul.f32 %v979, %v991
          %v1019 = vmul.f32 %v980, %v991
          %v1020 = vmul.f32 %v981, %v991
          %v1021 = vmul.f32 %v982, %v991
          %v1022 = vmul.f32 %v983, %v991
          %v1023 = vmul.f32 %v984, %v991
          %v1024 = vmul.f32 %v985, %v991
          %v1025 = vld [vmem:[%s321] sm:$0x1]
          %v1027 = vlaneseq
          %v1028 = vshrl.u32 %v1027, 7
          %v1029 = vsub.s32 0, %v1028
          %v1030 = vrot.slane %v1025, %v1029
          %v1032 = vadd.f32 %v993, %v1030
          %v1033 = vadd.f32 %v994, %v1030
          %v1034 = vadd.f32 %v995, %v1030
          %v1035 = vadd.f32 %v996, %v1030
          %v1036 = vadd.f32 %v997, %v1030
          %v1037 = vadd.f32 %v998, %v1030
          %v1038 = vadd.f32 %v999, %v1030
          %v1039 = vadd.f32 %v1000, %v1030
          %v1040 = vadd.f32 %v1001, %v1030
          %v1041 = vadd.f32 %v1002, %v1030
          %v1042 = vadd.f32 %v1003, %v1030
          %v1043 = vadd.f32 %v1004, %v1030
          %v1044 = vadd.f32 %v1005, %v1030
          %v1045 = vadd.f32 %v1006, %v1030
          %v1046 = vadd.f32 %v1007, %v1030
          %v1047 = vadd.f32 %v1008, %v1030
          %v1048 = vadd.f32 %v1009, %v1030
          %v1049 = vadd.f32 %v1010, %v1030
          %v1050 = vadd.f32 %v1011, %v1030
          %v1051 = vadd.f32 %v1012, %v1030
          %v1052 = vadd.f32 %v1013, %v1030
          %v1053 = vadd.f32 %v1014, %v1030
          %v1054 = vadd.f32 %v1015, %v1030
          %v1055 = vadd.f32 %v1016, %v1030
          %v1056 = vadd.f32 %v1017, %v1030
          %v1057 = vadd.f32 %v1018, %v1030
          %v1058 = vadd.f32 %v1019, %v1030
          %v1059 = vadd.f32 %v1020, %v1030
          %v1060 = vadd.f32 %v1021, %v1030
          %v1061 = vadd.f32 %v1022, %v1030
          %v1062 = vadd.f32 %v1023, %v1030
          %v1063 = vadd.f32 %v1024, %v1030
          %v1064 = vmax.f32 %v1032, 0.0
          %v1065 = vmax.f32 %v1033, 0.0
          %v1066 = vmax.f32 %v1034, 0.0
          %v1067 = vmax.f32 %v1035, 0.0
          %v1068 = vmax.f32 %v1036, 0.0
          %v1069 = vmax.f32 %v1037, 0.0
          %v1070 = vmax.f32 %v1038, 0.0
          %v1071 = vmax.f32 %v1039, 0.0
          %v1072 = vmax.f32 %v1040, 0.0
          %v1073 = vmax.f32 %v1041, 0.0
          %v1074 = vmax.f32 %v1042, 0.0
          %v1075 = vmax.f32 %v1043, 0.0
          %v1076 = vmax.f32 %v1044, 0.0
          %v1077 = vmax.f32 %v1045, 0.0
          %v1078 = vmax.f32 %v1046, 0.0
          %v1079 = vmax.f32 %v1047, 0.0
          %v1080 = vmax.f32 %v1048, 0.0
          %v1081 = vmax.f32 %v1049, 0.0
          %v1082 = vmax.f32 %v1050, 0.0
          %v1083 = vmax.f32 %v1051, 0.0
          %v1084 = vmax.f32 %v1052, 0.0
          %v1085 = vmax.f32 %v1053, 0.0
          %v1086 = vmax.f32 %v1054, 0.0
          %v1087 = vmax.f32 %v1055, 0.0
          %v1088 = vmax.f32 %v1056, 0.0
          %v1089 = vmax.f32 %v1057, 0.0
          %v1090 = vmax.f32 %v1058, 0.0
          %v1091 = vmax.f32 %v1059, 0.0
          %v1092 = vmax.f32 %v1060, 0.0
          %v1093 = vmax.f32 %v1061, 0.0
          %v1094 = vmax.f32 %v1062, 0.0
          %v1095 = vmax.f32 %v1063, 0.0
          %v1096 = vpack.c.bf16 %v1065, %v1064
          %v1097 = vpack.c.bf16 %v1067, %v1066
          %v1098 = vpack.c.bf16 %v1069, %v1068
          %v1099 = vpack.c.bf16 %v1071, %v1070
          %v1100 = vpack.c.bf16 %v1073, %v1072
          %v1101 = vpack.c.bf16 %v1075, %v1074
          %v1102 = vpack.c.bf16 %v1077, %v1076
          %v1103 = vpack.c.bf16 %v1079, %v1078
          %v1104 = vpack.c.bf16 %v1081, %v1080
          %v1105 = vpack.c.bf16 %v1083, %v1082
          %v1106 = vpack.c.bf16 %v1085, %v1084
          %v1107 = vpack.c.bf16 %v1087, %v1086
          %v1108 = vpack.c.bf16 %v1089, %v1088
          %v1109 = vpack.c.bf16 %v1091, %v1090
          %v1110 = vpack.c.bf16 %v1093, %v1092
          %v1111 = vpack.c.bf16 %v1095, %v1094
          %v1128 = vunpack.c.l.b16 %v1096
          %v1129 = vunpack.c.h.b16 %v1096
          %v1130 = vunpack.c.l.b16 %v1097
          %v1131 = vunpack.c.h.b16 %v1097
          %v1132 = vunpack.c.l.b16 %v1098
          %v1133 = vunpack.c.h.b16 %v1098
          %v1134 = vunpack.c.l.b16 %v1099
          %v1135 = vunpack.c.h.b16 %v1099
          %v1136 = vunpack.c.l.b16 %v1100
          %v1137 = vunpack.c.h.b16 %v1100
          %v1138 = vunpack.c.l.b16 %v1101
          %v1139 = vunpack.c.h.b16 %v1101
          %v1140 = vunpack.c.l.b16 %v1102
          %v1141 = vunpack.c.h.b16 %v1102
          %v1142 = vunpack.c.l.b16 %v1103
          %v1143 = vunpack.c.h.b16 %v1103
          %v1144 = vunpack.c.l.b16 %v1104
          %v1145 = vunpack.c.h.b16 %v1104
          %v1146 = vunpack.c.l.b16 %v1105
          %v1147 = vunpack.c.h.b16 %v1105
          %v1148 = vunpack.c.l.b16 %v1106
          %v1149 = vunpack.c.h.b16 %v1106
          %v1150 = vunpack.c.l.b16 %v1107
          %v1151 = vunpack.c.h.b16 %v1107
          %v1152 = vunpack.c.l.b16 %v1108
          %v1153 = vunpack.c.h.b16 %v1108
          %v1154 = vunpack.c.l.b16 %v1109
          %v1155 = vunpack.c.h.b16 %v1109
          %v1156 = vunpack.c.l.b16 %v1110
          %v1157 = vunpack.c.h.b16 %v1110
          %v1158 = vunpack.c.l.b16 %v1111
          %v1159 = vunpack.c.h.b16 %v1111
          %v1160 = vpack.c.b16 %v1128, %v1128
          %v1161 = vpack.c.b16 %v1129, %v1129
          %v1162 = vpack.c.b16 %v1130, %v1130
          %v1163 = vpack.c.b16 %v1131, %v1131
          %v1164 = vpack.c.b16 %v1132, %v1132
          %v1165 = vpack.c.b16 %v1133, %v1133
          %v1166 = vpack.c.b16 %v1134, %v1134
          %v1167 = vpack.c.b16 %v1135, %v1135
          %v1168 = vpack.c.b16 %v1136, %v1136
          %v1169 = vpack.c.b16 %v1137, %v1137
          %v1170 = vpack.c.b16 %v1138, %v1138
          %v1171 = vpack.c.b16 %v1139, %v1139
          %v1172 = vpack.c.b16 %v1140, %v1140
          %v1173 = vpack.c.b16 %v1141, %v1141
          %v1174 = vpack.c.b16 %v1142, %v1142
          %v1175 = vpack.c.b16 %v1143, %v1143
          %v1176 = vpack.c.b16 %v1144, %v1144
          %v1177 = vpack.c.b16 %v1145, %v1145
          %v1178 = vpack.c.b16 %v1146, %v1146
          %v1179 = vpack.c.b16 %v1147, %v1147
          %v1180 = vpack.c.b16 %v1148, %v1148
          %v1181 = vpack.c.b16 %v1149, %v1149
          %v1182 = vpack.c.b16 %v1150, %v1150
          %v1183 = vpack.c.b16 %v1151, %v1151
          %v1184 = vpack.c.b16 %v1152, %v1152
          %v1185 = vpack.c.b16 %v1153, %v1153
          %v1186 = vpack.c.b16 %v1154, %v1154
          %v1187 = vpack.c.b16 %v1155, %v1155
          %v1188 = vpack.c.b16 %v1156, %v1156
          %v1189 = vpack.c.b16 %v1157, %v1157
          %v1190 = vpack.c.b16 %v1158, %v1158
          %v1191 = vpack.c.b16 %v1159, %v1159
          %vm1224 = vcmask 519168
          %1225 = vst.msk [vmem:[%s333] sm:$0xf] %vm1224, %v1160
          %1226 = vst.msk [vmem:[%s333 + $0x4] sm:$0xf] %vm1224, %v1161
          %1227 = vst.msk [vmem:[%s333 + $0x8] sm:$0xf] %vm1224, %v1162
          %1228 = vst.msk [vmem:[%s333 + $0xc] sm:$0xf] %vm1224, %v1163
          %1229 = vst.msk [vmem:[%s333 + $0x10] sm:$0xf] %vm1224, %v1164
          %1230 = vst.msk [vmem:[%s333 + $0x14] sm:$0xf] %vm1224, %v1165
          %1231 = vst.msk [vmem:[%s333 + $0x18] sm:$0xf] %vm1224, %v1166
          %1232 = vst.msk [vmem:[%s333 + $0x1c] sm:$0xf] %vm1224, %v1167
          %1233 = vst.msk [vmem:[%s333 + $0x20] sm:$0xf] %vm1224, %v1168
          %1234 = vst.msk [vmem:[%s333 + $0x24] sm:$0xf] %vm1224, %v1169
          %1235 = vst.msk [vmem:[%s333 + $0x28] sm:$0xf] %vm1224, %v1170
          %1236 = vst.msk [vmem:[%s333 + $0x2c] sm:$0xf] %vm1224, %v1171
          %1237 = vst.msk [vmem:[%s333 + $0x30] sm:$0xf] %vm1224, %v1172
          %1238 = vst.msk [vmem:[%s333 + $0x34] sm:$0xf] %vm1224, %v1173
          %1239 = vst.msk [vmem:[%s333 + $0x38] sm:$0xf] %vm1224, %v1174
          %1240 = vst.msk [vmem:[%s333 + $0x3c] sm:$0xf] %vm1224, %v1175
          %1241 = vst.msk [vmem:[%s333 + $0x40] sm:$0xf] %vm1224, %v1176
          %1242 = vst.msk [vmem:[%s333 + $0x44] sm:$0xf] %vm1224, %v1177
          %1243 = vst.msk [vmem:[%s333 + $0x48] sm:$0xf] %vm1224, %v1178
          %1244 = vst.msk [vmem:[%s333 + $0x4c] sm:$0xf] %vm1224, %v1179
          %1245 = vst.msk [vmem:[%s333 + $0x50] sm:$0xf] %vm1224, %v1180
          %1246 = vst.msk [vmem:[%s333 + $0x54] sm:$0xf] %vm1224, %v1181
          %1247 = vst.msk [vmem:[%s333 + $0x58] sm:$0xf] %vm1224, %v1182
          %1248 = vst.msk [vmem:[%s333 + $0x5c] sm:$0xf] %vm1224, %v1183
          %1249 = vst.msk [vmem:[%s333 + $0x60] sm:$0xf] %vm1224, %v1184
          %1250 = vst.msk [vmem:[%s333 + $0x64] sm:$0xf] %vm1224, %v1185
          %1251 = vst.msk [vmem:[%s333 + $0x68] sm:$0xf] %vm1224, %v1186
          %1252 = vst.msk [vmem:[%s333 + $0x6c] sm:$0xf] %vm1224, %v1187
          %1253 = vst.msk [vmem:[%s333 + $0x70] sm:$0xf] %vm1224, %v1188
          %1254 = vst.msk [vmem:[%s333 + $0x74] sm:$0xf] %vm1224, %v1189
          %1255 = vst.msk [vmem:[%s333 + $0x78] sm:$0xf] %vm1224, %v1190
          %1256 = vst.msk [vmem:[%s333 + $0x7c] sm:$0xf] %vm1224, %v1191
        $region48: #{tpu_custom_call.1} parent=35 // pred_fallthru
          _
        %s1257 = smul.u32 32, %s25
        %p1258 = scmp.lt.s32.totalorder %s24, 1
        %s1259 = scalar_select %p1258, %s24, 1
        %p1260 = scmp.lt.s32.totalorder %s1257, 127
        %s1261 = scalar_select %p1260, %s1257, 127
        %p1262 = scmp.lt.s32.totalorder %s26, 0
        %s1263 = scalar_select %p1262, %s26, 0
        %s1264 = sadd.s32 %s1263, %s1261
        %s1265 = smul.addr %s1259, 128
        %s1266 = sadd.s32 %s1264, %s1265
        %s1267 = smul.addr %s1266, 4
        %s1268 = scalar_lea.vmem %s4, %s1267
        // Predicated region
        $region49: #{tpu_custom_call.1} parent=35 // pred_check
          %p1269 = pneg %p176
        $region50: #{tpu_custom_call.1} parent=35 // pred_check_branch
          %1271 = sbr.rel (%p1269) target = $region52
        $region51: #{tpu_custom_call.1} parent=35 // pred_region
          %s1272 = smul.u32 32, %s25
        $region52: #{tpu_custom_call.1} parent=35 // pred_fallthru
          _
      $region36: #{tpu_custom_call.1} parent=5 // pred_fallthru
        _
      %p1273 = scmp.le.s32.totalorder 2, %s13
      // Predicated region
      $region53: #{tpu_custom_call.1} parent=5 // pred_check
        %p1274 = pneg %p1273
      $region54: #{tpu_custom_call.1} parent=5 // pred_check_branch
        %1276 = sbr.rel (%p1274) target = $region56
      $region55: #{tpu_custom_call.1} parent=5 // pred_region
        %s1277 = ssub.s32 %s13, 2
        // Predicated region
        $region57: #{tpu_custom_call.1} parent=55 // pred_check
          %p1278 = pneg %p182
        $region58: #{tpu_custom_call.1} parent=55 // pred_check_branch
          %1280 = sbr.rel (%p1278) target = $region60
        $region59: #{tpu_custom_call.1} parent=55 // pred_region
          %s1281 = smul.u32 32, %s29
          %p1282 = scmp.lt.s32.totalorder %s28, 1
          %s1283 = scalar_select %p1282, %s28, 1
          %p1284 = scmp.lt.s32.totalorder %s1281, 127
          %s1285 = scalar_select %p1284, %s1281, 127
          %p1286 = scmp.lt.s32.totalorder %s30, 0
          %s1287 = scalar_select %p1286, %s30, 0
          %s1288 = sadd.s32 %s1287, %s1285
          %s1289 = smul.addr %s1283, 128
          %s1290 = sadd.s32 %s1288, %s1289
          %s1291 = smul.addr %s1290, 4
          %s1292 = scalar_lea.vmem %s4, %s1291
        $region60: #{tpu_custom_call.1} parent=55 // pred_fallthru
          _
      $region56: #{tpu_custom_call.1} parent=5 // pred_fallthru
        _
    $region6: #{tpu_custom_call.1} parent=1 // loop_footer
      %s17 = sadd.s32 1, %s13
    $region7: #{tpu_custom_call.1} parent=1 // loop_footer_branch
      %12 = sbr.rel target = $region3
    $region8: #{tpu_custom_call.1} parent=1 // loop_exit
      _
    %1293 = vsyncpa [#allocation4], 1
    %s1294 = scalar_lea.sflag [#allocation4], 1
    %1295 = vsyncpa %s1294, 1

</llo_original>
